<compile_context>
chip_gen: v7x
topology: tpu7x:2x2x1
jax: 0.10.0
libtpu: 0.0.40
codegen_flags: <defaults>
</compile_context>

<pallas_src>
import functools

import numpy as np

import jax
import jax.numpy as jnp
from jax import lax
from jax.experimental import pallas as pl
from jax.experimental.pallas import tpu as pltpu


# ----------------------------------------------------------------------------
# Static helpers (host side)
# ----------------------------------------------------------------------------
def _tap_masks(H, W):
    """(9, H*W) float32 masks; masks[k, hw] == 1 iff the source pixel of tap k
    (dy = k//3 - 1, dx = k%3 - 1) lies inside the image."""
    hw = np.arange(H * W)
    h, w = hw // W, hw % W
    m = np.zeros((9, H * W), np.float32)
    for k in range(9):
        dy, dx = k // 3 - 1, k % 3 - 1
        valid = (h + dy >= 0) & (h + dy < H) & (w + dx >= 0) & (w + dx < W)
        m[k] = valid.astype(np.float32)
    return m


def _pick_nb(N, C, HW, budget_bytes=8 << 20):
    """Images per grid step, sized by a VMEM working-set budget.

    Working set per step ~ 16x one image of f32 activations (double-buffered
    in/out blocks + (9C, nb*HW) im2col scratch + masked-tap temporary + bias
    maps/masks + GN temporaries).  Keep >= 2 grid steps when possible so the
    "parallel" grid axis can be split across v7x's two TensorCores.
    """
    per_img = C * HW * 4
    cands = [d for d in range(1, N + 1)
             if N % d == 0 and 16 * d * per_img <= budget_bytes]
    if not cands:
        cands = [1]
    two_step = [d for d in cands if N // d >= 2]
    return max(two_step) if two_step else max(cands)


# ----------------------------------------------------------------------------
# Fused NODE kernel: GN1+ReLU -> conv1 -> GN2+ReLU -> conv2 -> GN3
# One grid step processes `nb` images laid out as a (C, nb*HW) slab.
# ----------------------------------------------------------------------------
def _node_kernel(x_ref, masks_ref, seg_ref, gnw_ref, gnb_ref,
                 wx1_ref, bmap1_ref, wx2_ref, bmap2_ref,
                 o_ref, im2col_ref, *, nb, C, G, H, W, eps):
    HW = H * W
    L = nb * HW
    cg = C // G
    inv_cnt = 1.0 / float(cg * HW)

    x = x_ref[0].astype(jnp.float32)             # (C, L), lane-dense
    masks = masks_ref[...]                       # (9, L)  per-image border masks
    seg = seg_ref[...]                           # (L, nb) segment indicators

    # ---- per-image reductions via tiny MXU matmuls --------------------------
    def seg_sum(y):                              # (C, L) -> (C, nb)
        return jnp.dot(y, seg, preferred_element_type=jnp.float32)

    def seg_bcast(s):                            # (C, nb) -> (C, L)
        return lax.dot_general(s, seg, (((1,), (1,)), ((), ())),
                               preferred_element_type=jnp.float32)

    def group_sum(s):                            # (C, nb) -> group sums, back to (C, nb)
        if cg == 1:                              # dim <= 32: each channel is a group
            return s
        sg = jnp.sum(s.reshape(G, cg, nb), axis=1, keepdims=True)
        return jnp.broadcast_to(sg, (G, cg, nb)).reshape(C, nb)

    # ---- GroupNorm (+ optional ReLU), layout-preserving ----------------------
    def gnorm(y, idx, relu):
        gamma = gnw_ref[idx]                     # (C, 1), broadcasts along lanes
        beta = gnb_ref[idx]
        mean = seg_bcast(group_sum(seg_sum(y)) * inv_cnt)          # (C, L)
        cen = y - mean
        var = seg_bcast(group_sum(seg_sum(cen * cen)) * inv_cnt)
        out = cen * lax.rsqrt(var + eps) * gamma + beta
        if relu:
            out = jnp.maximum(out, 0.0)
        return out

    # ---- 3x3 / pad-1 conv: rolls + masks -> VMEM im2col -> ONE MXU matmul ----
    def conv3x3(y, wx_ref, bmap_ref):
        # Tap k source pixel = hw + s with s = dy*W + dx; roll by (-s) % L wraps
        # only at positions that the border mask zeroes anyway (including the
        # image-to-image boundaries on the lane axis).
        for k in range(9):
            dy, dx = k // 3 - 1, k % 3 - 1
            s = dy * W + dx
            if s == 0:
                tap = y                          # center tap: no shift, no mask
            else:
                tap = pltpu.roll(y, (-s) % L, axis=1) * masks[k:k + 1, :]
            im2col_ref[k * C:(k + 1) * C, :] = tap
        return jnp.dot(wx_ref[...], im2col_ref[...],
                       preferred_element_type=jnp.float32) + bmap_ref[...]

    h = gnorm(x, 0, relu=True)
    h = conv3x3(h, wx1_ref, bmap1_ref)
    h = gnorm(h, 1, relu=True)
    h = conv3x3(h, wx2_ref, bmap2_ref)
    h = gnorm(h, 2, relu=False)

    o_ref[0] = h.astype(o_ref.dtype)             # lane-dense unmasked store


# ----------------------------------------------------------------------------
# Wrapper
# ----------------------------------------------------------------------------
def node_forward(t, x, params, *, batch_block=None):
    N, C, H, W = x.shape
    HW = H * W
    G = min(32, C)
    assert C % G == 0, "GroupNorm requires C % num_groups == 0"
    Cout = C
    eps = 1e-5

    nb = _pick_nb(N, C, HW) if batch_block is None else batch_block
    assert N % nb == 0
    n_steps = N // nb
    L = nb * HW
    # TODO(synk): if H*W is not a multiple of 128, pad the lane axis to the
    # next multiple of 128 (and mask GN reductions) to keep stores unmasked.

    # Host-side layout plumbing: images of one grid step side-by-side on lanes.
    xr = (x.reshape(n_steps, nb, C, HW)
           .transpose(0, 2, 1, 3)
           .reshape(n_steps, C, L))

    masks = jnp.asarray(_tap_masks(H, W))                     # (9, HW) f32
    masks_t = jnp.tile(masks, (1, nb))                        # (9, L)

    # Segment-indicator matrix: seg[l, b] = 1 iff lane l belongs to image b.
    seg = (np.arange(L)[:, None] // HW ==
           np.arange(nb)[None, :]).astype(np.float32)
    seg = jnp.asarray(seg)                                    # (L, nb)

    # GroupNorm affine params -- independent of nb.
    gn_w = jnp.stack([params["g1"], params["g2"], params["g3"]]
                     ).astype(jnp.float32).reshape(3, C, 1)
    gn_b = jnp.stack([params["b1"], params["b2"], params["b3"]]
                     ).astype(jnp.float32).reshape(3, C, 1)

    # Conv weights: split off the t channel, flatten x-part to (Cout, 9*C) with
    # column index (k*C + ci) matching the im2col row order, and fold the bias
    # + border-aware t contribution into a (Cout, L) bias map.
    def conv_p(w, b):
        w = w.astype(jnp.float32)
        assert w.shape == (Cout, C + 1, 3, 3)
        w_t = w[:, 0, :, :].reshape(Cout, 9)                            # t channel
        w_x = jnp.transpose(w[:, 1:, :, :], (0, 2, 3, 1)).reshape(Cout, 9 * C)
        bmap = b.astype(jnp.float32).reshape(Cout, 1) + t * jnp.dot(w_t, masks)
        return w_x, jnp.tile(bmap, (1, nb))                             # (Cout, L)

    wx1, bmap1 = conv_p(params["w1"], params["cb1"])
    wx2, bmap2 = conv_p(params["w2"], params["cb2"])

    # Note: constant-index-map inputs below stay double-buffered (the default);
    # at these parameter sizes this is noise, so pipeline_mode is left alone.
    out = pl.pallas_call(
        functools.partial(_node_kernel, nb=nb, C=C, G=G, H=H, W=W, eps=eps),
        out_shape=jax.ShapeDtypeStruct((n_steps, C, L), x.dtype),
        grid=(n_steps,),
        in_specs=[
            pl.BlockSpec((1, C, L), lambda i: (i, 0, 0)),      # x slab
            pl.BlockSpec((9, L), lambda i: (0, 0)),            # tap masks (tiled)
            pl.BlockSpec((L, nb), lambda i: (0, 0)),           # segment matrix
            pl.BlockSpec((3, C, 1), lambda i: (0, 0, 0)),      # GN gammas
            pl.BlockSpec((3, C, 1), lambda i: (0, 0, 0)),      # GN betas
            pl.BlockSpec((Cout, 9 * C), lambda i: (0, 0)),     # conv1 weights
            pl.BlockSpec((Cout, L), lambda i: (0, 0)),         # conv1 bias map
            pl.BlockSpec((Cout, 9 * C), lambda i: (0, 0)),     # conv2 weights
            pl.BlockSpec((Cout, L), lambda i: (0, 0)),         # conv2 bias map
        ],
        out_specs=pl.BlockSpec((1, C, L), lambda i: (i, 0, 0)),
        scratch_shapes=[pltpu.VMEM((9 * C, L), jnp.float32)],  # im2col buffer
        compiler_params=pltpu.CompilerParams(
            dimension_semantics=("parallel",),
            vmem_limit_bytes=32 << 20),   # within physical VMEM on v5e/v6e/v7x
    )(xr, masks_t, seg, gn_w, gn_b, wx1, bmap1, wx2, bmap2)

    out = (out.reshape(n_steps, C, nb, HW)
              .transpose(0, 2, 1, 3)
              .reshape(N, C, H, W))
    return out


# ----------------------------------------------------------------------------
# Pure-JAX reference (for correctness check)
# ----------------------------------------------------------------------------
def _gn_ref(x, g, b, G, eps=1e-5, relu=False):
    N, C, H, W = x.shape
    xr = x.reshape(N, G, C // G, H, W)
    mean = xr.mean(axis=(2, 3, 4), keepdims=True)
    var = ((xr - mean) ** 2).mean(axis=(2, 3, 4), keepdims=True)
    y = ((xr - mean) / jnp.sqrt(var + eps)).reshape(N, C, H, W)
    y = y * g.reshape(1, C, 1, 1) + b.reshape(1, C, 1, 1)
    return jnp.maximum(y, 0.0) if relu else y


def _conv_ref(t, x, w, b):
    N, C, H, W = x.shape
    tt = jnp.full((N, 1, H, W), t, dtype=x.dtype)
    ttx = jnp.concatenate([tt, x], axis=1)
    y = lax.conv_general_dilated(ttx, w, (1, 1), ((1, 1), (1, 1)),
                                 dimension_numbers=("NCHW", "OIHW", "NCHW"))
    return y + b.reshape(1, -1, 1, 1)


def node_ref(t, x, p):
    G = min(32, x.shape[1])
    out = _gn_ref(x, p["g1"], p["b1"], G, relu=True)
    out = _conv_ref(t, out, p["w1"], p["cb1"])
    out = _gn_ref(out, p["g2"], p["b2"], G, relu=True)
    out = _conv_ref(t, out, p["w2"], p["cb2"])
    out = _gn_ref(out, p["g3"], p["b3"], G, relu=False)
    return out


if __name__ == "__main__":
    dim = 4
    N, H, W = 2, 16, 16

    key = jax.random.PRNGKey(0)
    keys = jax.random.split(key, 12)
    x = jax.random.normal(keys[0], (N, dim, H, W), jnp.float32)
    t = jnp.float32(0.5)

    params = {
        "g1": 1.0 + 0.1 * jax.random.normal(keys[1], (dim,), jnp.float32),
        "b1": 0.1 * jax.random.normal(keys[2], (dim,), jnp.float32),
        "g2": 1.0 + 0.1 * jax.random.normal(keys[3], (dim,), jnp.float32),
        "b2": 0.1 * jax.random.normal(keys[4], (dim,), jnp.float32),
        "g3": 1.0 + 0.1 * jax.random.normal(keys[5], (dim,), jnp.float32),
        "b3": 0.1 * jax.random.normal(keys[6], (dim,), jnp.float32),
        "w1": 0.1 * jax.random.normal(keys[7], (dim, dim + 1, 3, 3), jnp.float32),
        "cb1": 0.1 * jax.random.normal(keys[8], (dim,), jnp.float32),
        "w2": 0.1 * jax.random.normal(keys[9], (dim, dim + 1, 3, 3), jnp.float32),
        "cb2": 0.1 * jax.random.normal(keys[10], (dim,), jnp.float32),
    }

    node_fwd = jax.jit(node_forward)
    out = jax.block_until_ready(node_fwd(t, x, params))
    ref = jax.block_until_ready(node_ref(t, x, params))

    assert out.shape == (N, dim, H, W), out.shape
    assert jnp.allclose(out, ref, atol=1e-4, rtol=1e-4), (
        float(jnp.max(jnp.abs(out - ref))))

    print("KERNEL_OK")
</pallas_src>

<mosaic_0001>
module attributes {stable_mosaic.version = 11 : i64} {
  func.func @_node_kernel(%arg0: i32, %arg1: memref<1x4x256xf32, #tpu.memory_space<vmem>>, %arg2: memref<9x256xf32, #tpu.memory_space<vmem>>, %arg3: memref<256x1xf32, #tpu.memory_space<vmem>>, %arg4: memref<3x4x1xf32, #tpu.memory_space<vmem>>, %arg5: memref<3x4x1xf32, #tpu.memory_space<vmem>>, %arg6: memref<4x36xf32, #tpu.memory_space<vmem>>, %arg7: memref<4x256xf32, #tpu.memory_space<vmem>>, %arg8: memref<4x36xf32, #tpu.memory_space<vmem>>, %arg9: memref<4x256xf32, #tpu.memory_space<vmem>>, %arg10: memref<1x4x256xf32, #tpu.memory_space<vmem>>, %arg11: memref<36x256xf32, #tpu.memory_space<vmem>>) attributes {dimension_semantics = [#tpu.dimension_semantics<parallel>], iteration_bounds = array<i64: 2>, scalar_prefetch = 0 : i64, scratch_operands = 1 : i64, tpu.core_type = #tpu.core_type<tc>, window_params = [{transform_indices = @transform_0, window_bounds = array<i64: 1, 4, 256>}, {pipeline_mode = #tpu.pipeline_mode<synchronous>, transform_indices = @transform_1, window_bounds = array<i64: 9, 256>}, {pipeline_mode = #tpu.pipeline_mode<synchronous>, transform_indices = @transform_2, window_bounds = array<i64: 256, 1>}, {pipeline_mode = #tpu.pipeline_mode<synchronous>, transform_indices = @transform_3, window_bounds = array<i64: 3, 4, 1>}, {pipeline_mode = #tpu.pipeline_mode<synchronous>, transform_indices = @transform_4, window_bounds = array<i64: 3, 4, 1>}, {pipeline_mode = #tpu.pipeline_mode<synchronous>, transform_indices = @transform_5, window_bounds = array<i64: 4, 36>}, {pipeline_mode = #tpu.pipeline_mode<synchronous>, transform_indices = @transform_6, window_bounds = array<i64: 4, 256>}, {pipeline_mode = #tpu.pipeline_mode<synchronous>, transform_indices = @transform_7, window_bounds = array<i64: 4, 36>}, {pipeline_mode = #tpu.pipeline_mode<synchronous>, transform_indices = @transform_8, window_bounds = array<i64: 4, 256>}, {transform_indices = @transform_9, window_bounds = array<i64: 1, 4, 256>}]} {
    %c0 = arith.constant 0 : index
    %c0_0 = arith.constant 0 : index
    %c0_1 = arith.constant 0 : index
    %0 = vector.load %arg1[%c0, %c0_0, %c0_1] : memref<1x4x256xf32, #tpu.memory_space<vmem>>, vector<1x4x256xf32>
    %1 = vector.shape_cast %0 : vector<1x4x256xf32> to vector<4x256xf32>
    %c0_2 = arith.constant 0 : index
    %c0_3 = arith.constant 0 : index
    %2 = vector.load %arg2[%c0_2, %c0_3] : memref<9x256xf32, #tpu.memory_space<vmem>>, vector<9x256xf32>
    %c0_4 = arith.constant 0 : index
    %c0_5 = arith.constant 0 : index
    %3 = vector.load %arg3[%c0_4, %c0_5] : memref<256x1xf32, #tpu.memory_space<vmem>>, vector<256x1xf32>
    %c0_6 = arith.constant 0 : index
    %c0_7 = arith.constant 0 : index
    %c0_8 = arith.constant 0 : index
    %4 = vector.load %arg4[%c0_6, %c0_7, %c0_8] : memref<3x4x1xf32, #tpu.memory_space<vmem>>, vector<1x4x1xf32>
    %5 = vector.shape_cast %4 : vector<1x4x1xf32> to vector<4x1xf32>
    %c0_9 = arith.constant 0 : index
    %c0_10 = arith.constant 0 : index
    %c0_11 = arith.constant 0 : index
    %6 = vector.load %arg5[%c0_9, %c0_10, %c0_11] : memref<3x4x1xf32, #tpu.memory_space<vmem>>, vector<1x4x1xf32>
    %7 = vector.shape_cast %6 : vector<1x4x1xf32> to vector<4x1xf32>
    %cst = arith.constant dense<0.000000e+00> : vector<4x1xf32>
    %8 = tpu.matmul %1, %3, %cst {dimension_numbers = #tpu.dot_dimension_numbers<[1], [0], [0], [1], [0, 0, 1, 1], [], []>} : vector<4x256xf32>, vector<256x1xf32>, vector<4x1xf32> -> vector<4x1xf32>
    %cst_12 = arith.constant 3.906250e-03 : f32
    %9 = vector.broadcast %cst_12 : f32 to vector<4x1xf32>
    %10 = arith.mulf %8, %9 : vector<4x1xf32>
    %cst_13 = arith.constant dense<0.000000e+00> : vector<4x256xf32>
    %11 = tpu.matmul %10, %3, %cst_13 {dimension_numbers = #tpu.dot_dimension_numbers<[1], [1], [0], [0], [0, 0, 1, 0], [], []>} : vector<4x1xf32>, vector<256x1xf32>, vector<4x256xf32> -> vector<4x256xf32>
    %12 = arith.subf %1, %11 : vector<4x256xf32>
    %13 = arith.mulf %12, %12 : vector<4x256xf32>
    %cst_14 = arith.constant dense<0.000000e+00> : vector<4x1xf32>
    %14 = tpu.matmul %13, %3, %cst_14 {dimension_numbers = #tpu.dot_dimension_numbers<[1], [0], [0], [1], [0, 0, 1, 1], [], []>} : vector<4x256xf32>, vector<256x1xf32>, vector<4x1xf32> -> vector<4x1xf32>
    %cst_15 = arith.constant 3.906250e-03 : f32
    %15 = vector.broadcast %cst_15 : f32 to vector<4x1xf32>
    %16 = arith.mulf %14, %15 : vector<4x1xf32>
    %cst_16 = arith.constant dense<0.000000e+00> : vector<4x256xf32>
    %17 = tpu.matmul %16, %3, %cst_16 {dimension_numbers = #tpu.dot_dimension_numbers<[1], [1], [0], [0], [0, 0, 1, 0], [], []>} : vector<4x1xf32>, vector<256x1xf32>, vector<4x256xf32> -> vector<4x256xf32>
    %cst_17 = arith.constant 9.99999974E-6 : f32
    %18 = vector.broadcast %cst_17 : f32 to vector<4x256xf32>
    %19 = arith.addf %17, %18 : vector<4x256xf32>
    %20 = math.rsqrt %19 : vector<4x256xf32>
    %21 = arith.mulf %12, %20 : vector<4x256xf32>
    %22 = vector.broadcast %5 : vector<4x1xf32> to vector<4x256xf32>
    %23 = arith.mulf %21, %22 : vector<4x256xf32>
    %24 = vector.broadcast %7 : vector<4x1xf32> to vector<4x256xf32>
    %25 = arith.addf %23, %24 : vector<4x256xf32>
    %cst_18 = arith.constant 0.000000e+00 : f32
    %26 = vector.broadcast %cst_18 : f32 to vector<4x256xf32>
    %27 = arith.maximumf %25, %26 : vector<4x256xf32>
    %c17_i32 = arith.constant 17 : i32
    %28 = tpu.dynamic_rotate %27 by %c17_i32 dim 1 : vector<4x256xf32>, i32 -> vector<4x256xf32>
    %29 = vector.extract_strided_slice %2 {offsets = [0, 0], sizes = [1, 256], strides = [1, 1]} : vector<9x256xf32> to vector<1x256xf32>
    %30 = vector.broadcast %29 : vector<1x256xf32> to vector<4x256xf32>
    %31 = arith.mulf %28, %30 : vector<4x256xf32>
    %c0_19 = arith.constant 0 : index
    %c0_20 = arith.constant 0 : index
    %32 = vector.load %arg11[%c0_19, %c0_20] : memref<36x256xf32, #tpu.memory_space<vmem>>, vector<4x256xf32>
    tpu.vector_store %arg11[%c0_19, %c0_20], %31 {strides = array<i32>} : memref<36x256xf32, #tpu.memory_space<vmem>>, vector<4x256xf32>,
    %c16_i32 = arith.constant 16 : i32
    %33 = tpu.dynamic_rotate %27 by %c16_i32 dim 1 : vector<4x256xf32>, i32 -> vector<4x256xf32>
    %34 = vector.extract_strided_slice %2 {offsets = [1, 0], sizes = [1, 256], strides = [1, 1]} : vector<9x256xf32> to vector<1x256xf32>
    %35 = vector.broadcast %34 : vector<1x256xf32> to vector<4x256xf32>
    %36 = arith.mulf %33, %35 : vector<4x256xf32>
    %c4 = arith.constant 4 : index
    %c0_21 = arith.constant 0 : index
    %37 = vector.load %arg11[%c4, %c0_21] : memref<36x256xf32, #tpu.memory_space<vmem>>, vector<4x256xf32>
    tpu.vector_store %arg11[%c4, %c0_21], %36 {strides = array<i32>} : memref<36x256xf32, #tpu.memory_space<vmem>>, vector<4x256xf32>,
    %c15_i32 = arith.constant 15 : i32
    %38 = tpu.dynamic_rotate %27 by %c15_i32 dim 1 : vector<4x256xf32>, i32 -> vector<4x256xf32>
    %39 = vector.extract_strided_slice %2 {offsets = [2, 0], sizes = [1, 256], strides = [1, 1]} : vector<9x256xf32> to vector<1x256xf32>
    %40 = vector.broadcast %39 : vector<1x256xf32> to vector<4x256xf32>
    %41 = arith.mulf %38, %40 : vector<4x256xf32>
    %c8 = arith.constant 8 : index
    %c0_22 = arith.constant 0 : index
    %42 = vector.load %arg11[%c8, %c0_22] : memref<36x256xf32, #tpu.memory_space<vmem>>, vector<4x256xf32>
    tpu.vector_store %arg11[%c8, %c0_22], %41 {strides = array<i32>} : memref<36x256xf32, #tpu.memory_space<vmem>>, vector<4x256xf32>,
    %c1_i32 = arith.constant 1 : i32
    %43 = tpu.dynamic_rotate %27 by %c1_i32 dim 1 : vector<4x256xf32>, i32 -> vector<4x256xf32>
    %44 = vector.extract_strided_slice %2 {offsets = [3, 0], sizes = [1, 256], strides = [1, 1]} : vector<9x256xf32> to vector<1x256xf32>
    %45 = vector.broadcast %44 : vector<1x256xf32> to vector<4x256xf32>
    %46 = arith.mulf %43, %45 : vector<4x256xf32>
    %c12 = arith.constant 12 : index
    %c0_23 = arith.constant 0 : index
    %47 = vector.load %arg11[%c12, %c0_23] : memref<36x256xf32, #tpu.memory_space<vmem>>, vector<4x256xf32>
    tpu.vector_store %arg11[%c12, %c0_23], %46 {strides = array<i32>} : memref<36x256xf32, #tpu.memory_space<vmem>>, vector<4x256xf32>,
    %c16 = arith.constant 16 : index
    %c0_24 = arith.constant 0 : index
    %48 = vector.load %arg11[%c16, %c0_24] : memref<36x256xf32, #tpu.memory_space<vmem>>, vector<4x256xf32>
    tpu.vector_store %arg11[%c16, %c0_24], %27 {strides = array<i32>} : memref<36x256xf32, #tpu.memory_space<vmem>>, vector<4x256xf32>,
    %c255_i32 = arith.constant 255 : i32
    %49 = tpu.dynamic_rotate %27 by %c255_i32 dim 1 : vector<4x256xf32>, i32 -> vector<4x256xf32>
    %50 = vector.extract_strided_slice %2 {offsets = [5, 0], sizes = [1, 256], strides = [1, 1]} : vector<9x256xf32> to vector<1x256xf32>
    %51 = vector.broadcast %50 : vector<1x256xf32> to vector<4x256xf32>
    %52 = arith.mulf %49, %51 : vector<4x256xf32>
    %c20 = arith.constant 20 : index
    %c0_25 = arith.constant 0 : index
    %53 = vector.load %arg11[%c20, %c0_25] : memref<36x256xf32, #tpu.memory_space<vmem>>, vector<4x256xf32>
    tpu.vector_store %arg11[%c20, %c0_25], %52 {strides = array<i32>} : memref<36x256xf32, #tpu.memory_space<vmem>>, vector<4x256xf32>,
    %c241_i32 = arith.constant 241 : i32
    %54 = tpu.dynamic_rotate %27 by %c241_i32 dim 1 : vector<4x256xf32>, i32 -> vector<4x256xf32>
    %55 = vector.extract_strided_slice %2 {offsets = [6, 0], sizes = [1, 256], strides = [1, 1]} : vector<9x256xf32> to vector<1x256xf32>
    %56 = vector.broadcast %55 : vector<1x256xf32> to vector<4x256xf32>
    %57 = arith.mulf %54, %56 : vector<4x256xf32>
    %c24 = arith.constant 24 : index
    %c0_26 = arith.constant 0 : index
    %58 = vector.load %arg11[%c24, %c0_26] : memref<36x256xf32, #tpu.memory_space<vmem>>, vector<4x256xf32>
    tpu.vector_store %arg11[%c24, %c0_26], %57 {strides = array<i32>} : memref<36x256xf32, #tpu.memory_space<vmem>>, vector<4x256xf32>,
    %c240_i32 = arith.constant 240 : i32
    %59 = tpu.dynamic_rotate %27 by %c240_i32 dim 1 : vector<4x256xf32>, i32 -> vector<4x256xf32>
    %60 = vector.extract_strided_slice %2 {offsets = [7, 0], sizes = [1, 256], strides = [1, 1]} : vector<9x256xf32> to vector<1x256xf32>
    %61 = vector.broadcast %60 : vector<1x256xf32> to vector<4x256xf32>
    %62 = arith.mulf %59, %61 : vector<4x256xf32>
    %c28 = arith.constant 28 : index
    %c0_27 = arith.constant 0 : index
    %63 = vector.load %arg11[%c28, %c0_27] : memref<36x256xf32, #tpu.memory_space<vmem>>, vector<4x256xf32>
    tpu.vector_store %arg11[%c28, %c0_27], %62 {strides = array<i32>} : memref<36x256xf32, #tpu.memory_space<vmem>>, vector<4x256xf32>,
    %c239_i32 = arith.constant 239 : i32
    %64 = tpu.dynamic_rotate %27 by %c239_i32 dim 1 : vector<4x256xf32>, i32 -> vector<4x256xf32>
    %65 = vector.extract_strided_slice %2 {offsets = [8, 0], sizes = [1, 256], strides = [1, 1]} : vector<9x256xf32> to vector<1x256xf32>
    %66 = vector.broadcast %65 : vector<1x256xf32> to vector<4x256xf32>
    %67 = arith.mulf %64, %66 : vector<4x256xf32>
    %c32 = arith.constant 32 : index
    %c0_28 = arith.constant 0 : index
    %68 = vector.load %arg11[%c32, %c0_28] : memref<36x256xf32, #tpu.memory_space<vmem>>, vector<4x256xf32>
    tpu.vector_store %arg11[%c32, %c0_28], %67 {strides = array<i32>} : memref<36x256xf32, #tpu.memory_space<vmem>>, vector<4x256xf32>,
    %c0_29 = arith.constant 0 : index
    %c0_30 = arith.constant 0 : index
    %69 = vector.load %arg6[%c0_29, %c0_30] : memref<4x36xf32, #tpu.memory_space<vmem>>, vector<4x36xf32>
    %c0_31 = arith.constant 0 : index
    %c0_32 = arith.constant 0 : index
    %70 = vector.load %arg11[%c0_31, %c0_32] : memref<36x256xf32, #tpu.memory_space<vmem>>, vector<36x256xf32>
    %cst_33 = arith.constant dense<0.000000e+00> : vector<4x256xf32>
    %71 = tpu.matmul %69, %70, %cst_33 {dimension_numbers = #tpu.dot_dimension_numbers<[1], [0], [0], [1], [0, 0, 1, 1], [], []>} : vector<4x36xf32>, vector<36x256xf32>, vector<4x256xf32> -> vector<4x256xf32>
    %c0_34 = arith.constant 0 : index
    %c0_35 = arith.constant 0 : index
    %72 = vector.load %arg7[%c0_34, %c0_35] : memref<4x256xf32, #tpu.memory_space<vmem>>, vector<4x256xf32>
    %73 = arith.addf %71, %72 : vector<4x256xf32>
    %c1 = arith.constant 1 : index
    %c0_36 = arith.constant 0 : index
    %c0_37 = arith.constant 0 : index
    %74 = vector.load %arg4[%c1, %c0_36, %c0_37] : memref<3x4x1xf32, #tpu.memory_space<vmem>>, vector<1x4x1xf32>
    %75 = vector.shape_cast %74 : vector<1x4x1xf32> to vector<4x1xf32>
    %c1_38 = arith.constant 1 : index
    %c0_39 = arith.constant 0 : index
    %c0_40 = arith.constant 0 : index
    %76 = vector.load %arg5[%c1_38, %c0_39, %c0_40] : memref<3x4x1xf32, #tpu.memory_space<vmem>>, vector<1x4x1xf32>
    %77 = vector.shape_cast %76 : vector<1x4x1xf32> to vector<4x1xf32>
    %cst_41 = arith.constant dense<0.000000e+00> : vector<4x1xf32>
    %78 = tpu.matmul %73, %3, %cst_41 {dimension_numbers = #tpu.dot_dimension_numbers<[1], [0], [0], [1], [0, 0, 1, 1], [], []>} : vector<4x256xf32>, vector<256x1xf32>, vector<4x1xf32> -> vector<4x1xf32>
    %cst_42 = arith.constant 3.906250e-03 : f32
    %79 = vector.broadcast %cst_42 : f32 to vector<4x1xf32>
    %80 = arith.mulf %78, %79 : vector<4x1xf32>
    %cst_43 = arith.constant dense<0.000000e+00> : vector<4x256xf32>
    %81 = tpu.matmul %80, %3, %cst_43 {dimension_numbers = #tpu.dot_dimension_numbers<[1], [1], [0], [0], [0, 0, 1, 0], [], []>} : vector<4x1xf32>, vector<256x1xf32>, vector<4x256xf32> -> vector<4x256xf32>
    %82 = arith.subf %73, %81 : vector<4x256xf32>
    %83 = arith.mulf %82, %82 : vector<4x256xf32>
    %cst_44 = arith.constant dense<0.000000e+00> : vector<4x1xf32>
    %84 = tpu.matmul %83, %3, %cst_44 {dimension_numbers = #tpu.dot_dimension_numbers<[1], [0], [0], [1], [0, 0, 1, 1], [], []>} : vector<4x256xf32>, vector<256x1xf32>, vector<4x1xf32> -> vector<4x1xf32>
    %cst_45 = arith.constant 3.906250e-03 : f32
    %85 = vector.broadcast %cst_45 : f32 to vector<4x1xf32>
    %86 = arith.mulf %84, %85 : vector<4x1xf32>
    %cst_46 = arith.constant dense<0.000000e+00> : vector<4x256xf32>
    %87 = tpu.matmul %86, %3, %cst_46 {dimension_numbers = #tpu.dot_dimension_numbers<[1], [1], [0], [0], [0, 0, 1, 0], [], []>} : vector<4x1xf32>, vector<256x1xf32>, vector<4x256xf32> -> vector<4x256xf32>
    %cst_47 = arith.constant 9.99999974E-6 : f32
    %88 = vector.broadcast %cst_47 : f32 to vector<4x256xf32>
    %89 = arith.addf %87, %88 : vector<4x256xf32>
    %90 = math.rsqrt %89 : vector<4x256xf32>
    %91 = arith.mulf %82, %90 : vector<4x256xf32>
    %92 = vector.broadcast %75 : vector<4x1xf32> to vector<4x256xf32>
    %93 = arith.mulf %91, %92 : vector<4x256xf32>
    %94 = vector.broadcast %77 : vector<4x1xf32> to vector<4x256xf32>
    %95 = arith.addf %93, %94 : vector<4x256xf32>
    %cst_48 = arith.constant 0.000000e+00 : f32
    %96 = vector.broadcast %cst_48 : f32 to vector<4x256xf32>
    %97 = arith.maximumf %95, %96 : vector<4x256xf32>
    %c17_i32_49 = arith.constant 17 : i32
    %98 = tpu.dynamic_rotate %97 by %c17_i32_49 dim 1 : vector<4x256xf32>, i32 -> vector<4x256xf32>
    %99 = vector.extract_strided_slice %2 {offsets = [0, 0], sizes = [1, 256], strides = [1, 1]} : vector<9x256xf32> to vector<1x256xf32>
    %100 = vector.broadcast %99 : vector<1x256xf32> to vector<4x256xf32>
    %101 = arith.mulf %98, %100 : vector<4x256xf32>
    %c0_50 = arith.constant 0 : index
    %c0_51 = arith.constant 0 : index
    %102 = vector.load %arg11[%c0_50, %c0_51] : memref<36x256xf32, #tpu.memory_space<vmem>>, vector<4x256xf32>
    tpu.vector_store %arg11[%c0_50, %c0_51], %101 {strides = array<i32>} : memref<36x256xf32, #tpu.memory_space<vmem>>, vector<4x256xf32>,
    %c16_i32_52 = arith.constant 16 : i32
    %103 = tpu.dynamic_rotate %97 by %c16_i32_52 dim 1 : vector<4x256xf32>, i32 -> vector<4x256xf32>
    %104 = vector.extract_strided_slice %2 {offsets = [1, 0], sizes = [1, 256], strides = [1, 1]} : vector<9x256xf32> to vector<1x256xf32>
    %105 = vector.broadcast %104 : vector<1x256xf32> to vector<4x256xf32>
    %106 = arith.mulf %103, %105 : vector<4x256xf32>
    %c4_53 = arith.constant 4 : index
    %c0_54 = arith.constant 0 : index
    %107 = vector.load %arg11[%c4_53, %c0_54] : memref<36x256xf32, #tpu.memory_space<vmem>>, vector<4x256xf32>
    tpu.vector_store %arg11[%c4_53, %c0_54], %106 {strides = array<i32>} : memref<36x256xf32, #tpu.memory_space<vmem>>, vector<4x256xf32>,
    %c15_i32_55 = arith.constant 15 : i32
    %108 = tpu.dynamic_rotate %97 by %c15_i32_55 dim 1 : vector<4x256xf32>, i32 -> vector<4x256xf32>
    %109 = vector.extract_strided_slice %2 {offsets = [2, 0], sizes = [1, 256], strides = [1, 1]} : vector<9x256xf32> to vector<1x256xf32>
    %110 = vector.broadcast %109 : vector<1x256xf32> to vector<4x256xf32>
    %111 = arith.mulf %108, %110 : vector<4x256xf32>
    %c8_56 = arith.constant 8 : index
    %c0_57 = arith.constant 0 : index
    %112 = vector.load %arg11[%c8_56, %c0_57] : memref<36x256xf32, #tpu.memory_space<vmem>>, vector<4x256xf32>
    tpu.vector_store %arg11[%c8_56, %c0_57], %111 {strides = array<i32>} : memref<36x256xf32, #tpu.memory_space<vmem>>, vector<4x256xf32>,
    %c1_i32_58 = arith.constant 1 : i32
    %113 = tpu.dynamic_rotate %97 by %c1_i32_58 dim 1 : vector<4x256xf32>, i32 -> vector<4x256xf32>
    %114 = vector.extract_strided_slice %2 {offsets = [3, 0], sizes = [1, 256], strides = [1, 1]} : vector<9x256xf32> to vector<1x256xf32>
    %115 = vector.broadcast %114 : vector<1x256xf32> to vector<4x256xf32>
    %116 = arith.mulf %113, %115 : vector<4x256xf32>
    %c12_59 = arith.constant 12 : index
    %c0_60 = arith.constant 0 : index
    %117 = vector.load %arg11[%c12_59, %c0_60] : memref<36x256xf32, #tpu.memory_space<vmem>>, vector<4x256xf32>
    tpu.vector_store %arg11[%c12_59, %c0_60], %116 {strides = array<i32>} : memref<36x256xf32, #tpu.memory_space<vmem>>, vector<4x256xf32>,
    %c16_61 = arith.constant 16 : index
    %c0_62 = arith.constant 0 : index
    %118 = vector.load %arg11[%c16_61, %c0_62] : memref<36x256xf32, #tpu.memory_space<vmem>>, vector<4x256xf32>
    tpu.vector_store %arg11[%c16_61, %c0_62], %97 {strides = array<i32>} : memref<36x256xf32, #tpu.memory_space<vmem>>, vector<4x256xf32>,
    %c255_i32_63 = arith.constant 255 : i32
    %119 = tpu.dynamic_rotate %97 by %c255_i32_63 dim 1 : vector<4x256xf32>, i32 -> vector<4x256xf32>
    %120 = vector.extract_strided_slice %2 {offsets = [5, 0], sizes = [1, 256], strides = [1, 1]} : vector<9x256xf32> to vector<1x256xf32>
    %121 = vector.broadcast %120 : vector<1x256xf32> to vector<4x256xf32>
    %122 = arith.mulf %119, %121 : vector<4x256xf32>
    %c20_64 = arith.constant 20 : index
    %c0_65 = arith.constant 0 : index
    %123 = vector.load %arg11[%c20_64, %c0_65] : memref<36x256xf32, #tpu.memory_space<vmem>>, vector<4x256xf32>
    tpu.vector_store %arg11[%c20_64, %c0_65], %122 {strides = array<i32>} : memref<36x256xf32, #tpu.memory_space<vmem>>, vector<4x256xf32>,
    %c241_i32_66 = arith.constant 241 : i32
    %124 = tpu.dynamic_rotate %97 by %c241_i32_66 dim 1 : vector<4x256xf32>, i32 -> vector<4x256xf32>
    %125 = vector.extract_strided_slice %2 {offsets = [6, 0], sizes = [1, 256], strides = [1, 1]} : vector<9x256xf32> to vector<1x256xf32>
    %126 = vector.broadcast %125 : vector<1x256xf32> to vector<4x256xf32>
    %127 = arith.mulf %124, %126 : vector<4x256xf32>
    %c24_67 = arith.constant 24 : index
    %c0_68 = arith.constant 0 : index
    %128 = vector.load %arg11[%c24_67, %c0_68] : memref<36x256xf32, #tpu.memory_space<vmem>>, vector<4x256xf32>
    tpu.vector_store %arg11[%c24_67, %c0_68], %127 {strides = array<i32>} : memref<36x256xf32, #tpu.memory_space<vmem>>, vector<4x256xf32>,
    %c240_i32_69 = arith.constant 240 : i32
    %129 = tpu.dynamic_rotate %97 by %c240_i32_69 dim 1 : vector<4x256xf32>, i32 -> vector<4x256xf32>
    %130 = vector.extract_strided_slice %2 {offsets = [7, 0], sizes = [1, 256], strides = [1, 1]} : vector<9x256xf32> to vector<1x256xf32>
    %131 = vector.broadcast %130 : vector<1x256xf32> to vector<4x256xf32>
    %132 = arith.mulf %129, %131 : vector<4x256xf32>
    %c28_70 = arith.constant 28 : index
    %c0_71 = arith.constant 0 : index
    %133 = vector.load %arg11[%c28_70, %c0_71] : memref<36x256xf32, #tpu.memory_space<vmem>>, vector<4x256xf32>
    tpu.vector_store %arg11[%c28_70, %c0_71], %132 {strides = array<i32>} : memref<36x256xf32, #tpu.memory_space<vmem>>, vector<4x256xf32>,
    %c239_i32_72 = arith.constant 239 : i32
    %134 = tpu.dynamic_rotate %97 by %c239_i32_72 dim 1 : vector<4x256xf32>, i32 -> vector<4x256xf32>
    %135 = vector.extract_strided_slice %2 {offsets = [8, 0], sizes = [1, 256], strides = [1, 1]} : vector<9x256xf32> to vector<1x256xf32>
    %136 = vector.broadcast %135 : vector<1x256xf32> to vector<4x256xf32>
    %137 = arith.mulf %134, %136 : vector<4x256xf32>
    %c32_73 = arith.constant 32 : index
    %c0_74 = arith.constant 0 : index
    %138 = vector.load %arg11[%c32_73, %c0_74] : memref<36x256xf32, #tpu.memory_space<vmem>>, vector<4x256xf32>
    tpu.vector_store %arg11[%c32_73, %c0_74], %137 {strides = array<i32>} : memref<36x256xf32, #tpu.memory_space<vmem>>, vector<4x256xf32>,
    %c0_75 = arith.constant 0 : index
    %c0_76 = arith.constant 0 : index
    %139 = vector.load %arg8[%c0_75, %c0_76] : memref<4x36xf32, #tpu.memory_space<vmem>>, vector<4x36xf32>
    %c0_77 = arith.constant 0 : index
    %c0_78 = arith.constant 0 : index
    %140 = vector.load %arg11[%c0_77, %c0_78] : memref<36x256xf32, #tpu.memory_space<vmem>>, vector<36x256xf32>
    %cst_79 = arith.constant dense<0.000000e+00> : vector<4x256xf32>
    %141 = tpu.matmul %139, %140, %cst_79 {dimension_numbers = #tpu.dot_dimension_numbers<[1], [0], [0], [1], [0, 0, 1, 1], [], []>} : vector<4x36xf32>, vector<36x256xf32>, vector<4x256xf32> -> vector<4x256xf32>
    %c0_80 = arith.constant 0 : index
    %c0_81 = arith.constant 0 : index
    %142 = vector.load %arg9[%c0_80, %c0_81] : memref<4x256xf32, #tpu.memory_space<vmem>>, vector<4x256xf32>
    %143 = arith.addf %141, %142 : vector<4x256xf32>
    %c2 = arith.constant 2 : index
    %c0_82 = arith.constant 0 : index
    %c0_83 = arith.constant 0 : index
    %144 = vector.load %arg4[%c2, %c0_82, %c0_83] : memref<3x4x1xf32, #tpu.memory_space<vmem>>, vector<1x4x1xf32>
    %145 = vector.shape_cast %144 : vector<1x4x1xf32> to vector<4x1xf32>
    %c2_84 = arith.constant 2 : index
    %c0_85 = arith.constant 0 : index
    %c0_86 = arith.constant 0 : index
    %146 = vector.load %arg5[%c2_84, %c0_85, %c0_86] : memref<3x4x1xf32, #tpu.memory_space<vmem>>, vector<1x4x1xf32>
    %147 = vector.shape_cast %146 : vector<1x4x1xf32> to vector<4x1xf32>
    %cst_87 = arith.constant dense<0.000000e+00> : vector<4x1xf32>
    %148 = tpu.matmul %143, %3, %cst_87 {dimension_numbers = #tpu.dot_dimension_numbers<[1], [0], [0], [1], [0, 0, 1, 1], [], []>} : vector<4x256xf32>, vector<256x1xf32>, vector<4x1xf32> -> vector<4x1xf32>
    %cst_88 = arith.constant 3.906250e-03 : f32
    %149 = vector.broadcast %cst_88 : f32 to vector<4x1xf32>
    %150 = arith.mulf %148, %149 : vector<4x1xf32>
    %cst_89 = arith.constant dense<0.000000e+00> : vector<4x256xf32>
    %151 = tpu.matmul %150, %3, %cst_89 {dimension_numbers = #tpu.dot_dimension_numbers<[1], [1], [0], [0], [0, 0, 1, 0], [], []>} : vector<4x1xf32>, vector<256x1xf32>, vector<4x256xf32> -> vector<4x256xf32>
    %152 = arith.subf %143, %151 : vector<4x256xf32>
    %153 = arith.mulf %152, %152 : vector<4x256xf32>
    %cst_90 = arith.constant dense<0.000000e+00> : vector<4x1xf32>
    %154 = tpu.matmul %153, %3, %cst_90 {dimension_numbers = #tpu.dot_dimension_numbers<[1], [0], [0], [1], [0, 0, 1, 1], [], []>} : vector<4x256xf32>, vector<256x1xf32>, vector<4x1xf32> -> vector<4x1xf32>
    %cst_91 = arith.constant 3.906250e-03 : f32
    %155 = vector.broadcast %cst_91 : f32 to vector<4x1xf32>
    %156 = arith.mulf %154, %155 : vector<4x1xf32>
    %cst_92 = arith.constant dense<0.000000e+00> : vector<4x256xf32>
    %157 = tpu.matmul %156, %3, %cst_92 {dimension_numbers = #tpu.dot_dimension_numbers<[1], [1], [0], [0], [0, 0, 1, 0], [], []>} : vector<4x1xf32>, vector<256x1xf32>, vector<4x256xf32> -> vector<4x256xf32>
    %cst_93 = arith.constant 9.99999974E-6 : f32
    %158 = vector.broadcast %cst_93 : f32 to vector<4x256xf32>
    %159 = arith.addf %157, %158 : vector<4x256xf32>
    %160 = math.rsqrt %159 : vector<4x256xf32>
    %161 = arith.mulf %152, %160 : vector<4x256xf32>
    %162 = vector.broadcast %145 : vector<4x1xf32> to vector<4x256xf32>
    %163 = arith.mulf %161, %162 : vector<4x256xf32>
    %164 = vector.broadcast %147 : vector<4x1xf32> to vector<4x256xf32>
    %165 = arith.addf %163, %164 : vector<4x256xf32>
    %c0_94 = arith.constant 0 : index
    %c0_95 = arith.constant 0 : index
    %c0_96 = arith.constant 0 : index
    %166 = vector.load %arg10[%c0_94, %c0_95, %c0_96] : memref<1x4x256xf32, #tpu.memory_space<vmem>>, vector<1x4x256xf32>
    %167 = vector.shape_cast %166 : vector<1x4x256xf32> to vector<4x256xf32>
    %168 = vector.shape_cast %165 : vector<4x256xf32> to vector<1x4x256xf32>
    tpu.vector_store %arg10[%c0_94, %c0_95, %c0_96], %168 {strides = array<i32>} : memref<1x4x256xf32, #tpu.memory_space<vmem>>, vector<1x4x256xf32>,
    return
  }
  func.func @transform_0(%arg0: i32) -> (i32, i32, i32) {
    %c0_i32 = arith.constant 0 : i32
    %c0_i32_0 = arith.constant 0 : i32
    %c0_i32_1 = arith.constant 0 : i32
    return %arg0, %c0_i32, %c0_i32_0 : i32, i32, i32
  }
  func.func @transform_1(%arg0: i32) -> (i32, i32) {
    %c0_i32 = arith.constant 0 : i32
    %c0_i32_0 = arith.constant 0 : i32
    %c0_i32_1 = arith.constant 0 : i32
    return %c0_i32, %c0_i32_0 : i32, i32
  }
  func.func @transform_2(%arg0: i32) -> (i32, i32) {
    %c0_i32 = arith.constant 0 : i32
    %c0_i32_0 = arith.constant 0 : i32
    %c0_i32_1 = arith.constant 0 : i32
    return %c0_i32, %c0_i32_0 : i32, i32
  }
  func.func @transform_3(%arg0: i32) -> (i32, i32, i32) {
    %c0_i32 = arith.constant 0 : i32
    %c0_i32_0 = arith.constant 0 : i32
    %c0_i32_1 = arith.constant 0 : i32
    %c0_i32_2 = arith.constant 0 : i32
    return %c0_i32, %c0_i32_0, %c0_i32_1 : i32, i32, i32
  }
  func.func @transform_4(%arg0: i32) -> (i32, i32, i32) {
    %c0_i32 = arith.constant 0 : i32
    %c0_i32_0 = arith.constant 0 : i32
    %c0_i32_1 = arith.constant 0 : i32
    %c0_i32_2 = arith.constant 0 : i32
    return %c0_i32, %c0_i32_0, %c0_i32_1 : i32, i32, i32
  }
  func.func @transform_5(%arg0: i32) -> (i32, i32) {
    %c0_i32 = arith.constant 0 : i32
    %c0_i32_0 = arith.constant 0 : i32
    %c0_i32_1 = arith.constant 0 : i32
    return %c0_i32, %c0_i32_0 : i32, i32
  }
  func.func @transform_6(%arg0: i32) -> (i32, i32) {
    %c0_i32 = arith.constant 0 : i32
    %c0_i32_0 = arith.constant 0 : i32
    %c0_i32_1 = arith.constant 0 : i32
    return %c0_i32, %c0_i32_0 : i32, i32
  }
  func.func @transform_7(%arg0: i32) -> (i32, i32) {
    %c0_i32 = arith.constant 0 : i32
    %c0_i32_0 = arith.constant 0 : i32
    %c0_i32_1 = arith.constant 0 : i32
    return %c0_i32, %c0_i32_0 : i32, i32
  }
  func.func @transform_8(%arg0: i32) -> (i32, i32) {
    %c0_i32 = arith.constant 0 : i32
    %c0_i32_0 = arith.constant 0 : i32
    %c0_i32_1 = arith.constant 0 : i32
    return %c0_i32, %c0_i32_0 : i32, i32
  }
  func.func @transform_9(%arg0: i32) -> (i32, i32, i32) {
    %c0_i32 = arith.constant 0 : i32
    %c0_i32_0 = arith.constant 0 : i32
    %c0_i32_1 = arith.constant 0 : i32
    return %arg0, %c0_i32, %c0_i32_0 : i32, i32, i32
  }
}

</mosaic_0001>

<llo_original>
// kernel: node_forward.1
$region0: #{node_forward.1}
  #allocation0 [shape = 'u32[]', space=smem, size = 0x4, offset = 0x4, fixed_abs, tag = 'smem constant byte address 0x4 - core index']
  #allocation1 [shape = 'u32[144,128]{1,0:T(1,128)}', space=vmem, size = 0x12000, scoped, tag = 'internal scratch']
  #allocation2 [shape = 'f32[36,256]{1,0:T(8,128)}', space=vmem, size = 0xa000, scoped, tag = 'scratch operand']
  %s0 = inlined_call_operand.vmem [shape: f32[2,4,256], index: 0, kind: input, shape index: {}]
  %s1 = inlined_call_operand.vmem [shape: f32[9,256], index: 1, kind: input, shape index: {}]
  %s2 = inlined_call_operand.vmem [shape: f32[256,1], index: 2, kind: input, shape index: {}]
  %s3 = inlined_call_operand.vmem [shape: f32[3,4,1], index: 3, kind: input, shape index: {}]
  %s4 = inlined_call_operand.vmem [shape: f32[3,4,1], index: 4, kind: input, shape index: {}]
  %s5 = inlined_call_operand.vmem [shape: f32[4,36], index: 5, kind: input, shape index: {}]
  %s6 = inlined_call_operand.vmem [shape: f32[4,256], index: 6, kind: input, shape index: {}]
  %s7 = inlined_call_operand.vmem [shape: f32[4,36], index: 7, kind: input, shape index: {}]
  %s8 = inlined_call_operand.vmem [shape: f32[4,256], index: 8, kind: input, shape index: {}]
  %s9 = inlined_call_operand.vmem [shape: f32[2,4,256], index: 9, kind: output, shape index: {}]
  %s10 = sld [smem:[#allocation0]]
  $region69: #{node_forward.1} parent=0
    _
  %s12 = ssub.s32 1, %s10
  %s13 = scalar_select 0, %s12, %s10
  loop: start=0, step=1, limit=4
  $region2: #{node_forward.1} parent=0 // loop_pre_header
    _
  $region3: #{node_forward.1} parent=0 // loop_header
    %s15 = sphi 0, %s19
    %p16 = scmp.ge.s32.totalorder %s15, 4
    %s25 = sphi 0, %s27
    %s28 = sphi 0, %s25
    %s29 = sphi 0, %s28
    %s45 = sphi 0, %s29
    %s49 = sphi 0, %s49
    %s51 = sphi 0, %s49
    %s52 = sphi 0, %s51
    %s66 = sphi 0, %s52
    %s70 = sphi 0, %s70
    %s72 = sphi 0, %s70
    %s73 = sphi 0, %s72
    %s87 = sphi 0, %s73
    %s91 = sphi 0, %s91
    %s93 = sphi 0, %s91
    %s94 = sphi 0, %s93
    %s108 = sphi 0, %s94
    %s112 = sphi 0, %s112
    %s114 = sphi 0, %s112
    %s115 = sphi 0, %s114
    %s129 = sphi 0, %s115
    %s133 = sphi 0, %s133
    %s135 = sphi 0, %s133
    %s136 = sphi 0, %s135
    %s150 = sphi 0, %s136
    %s154 = sphi 0, %s154
    %s156 = sphi 0, %s154
    %s157 = sphi 0, %s156
    %s171 = sphi 0, %s157
    %s175 = sphi 0, %s175
    %s177 = sphi 0, %s175
    %s178 = sphi 0, %s177
    %s192 = sphi 0, %s178
    %s196 = sphi 0, %s196
    %s198 = sphi 0, %s196
    %s199 = sphi 0, %s198
    %s213 = sphi 0, %s199
    %s219 = sphi 0, %s221
    %s222 = sphi 0, %s219
    %s223 = sphi 0, %s222
    %s239 = sphi 0, %s223
  $region4: #{node_forward.1} parent=0 // loop_header_branch
    %18 = sbr.rel (%p16) target = $region8
  $region5: #{node_forward.1} parent=0 // loop_body
    %s20 = ssub.s32 %s15, 1
    %s21 = ssub.s32 %s15, 2
    %s22 = sadd.s32 %s15, 1
    %s23 = ssub.s32 %s15, %s22
    %p24 = scmp.eq.s32.totalorder %s23, 0
    %s26 = sadd.s32 %s25, 1
    %s27 = scalar_select %p24, %s25, %s26
    %p30 = pneg %p24
    %p31 = scmp.eq.s32.totalorder %s15, 1
    %p32 = por %p30, %p31
    %p33 = scmp.ne.s32.totalorder %s25, %s28
    %p34 = scmp.eq.s32.totalorder %s15, 0
    %p35 = por %p33, %p34
    %p36 = scmp.ne.s32.totalorder %s25, %s28
    %p37 = scmp.eq.s32.totalorder %s20, 1
    %p38 = por %p36, %p37
    %p39 = scmp.ne.s32.totalorder %s28, %s29
    %p40 = scmp.eq.s32.totalorder %s20, 0
    %p41 = por %p39, %p40
    %p42 = scmp.ne.s32.totalorder %s28, %s29
    %p43 = scmp.eq.s32.totalorder %s21, 1
    %p44 = por %p42, %p43
    %p46 = scmp.ne.s32.totalorder %s29, %s45
    %p47 = scmp.eq.s32.totalorder %s21, 0
    %p48 = por %p46, %p47
    %s50 = sadd.s32 %s49, 1
    %p53 = scmp.eq.s32.totalorder %s15, 1
    %p54 = scmp.ne.s32.totalorder %s49, %s51
    %p55 = scmp.eq.s32.totalorder %s15, 0
    %p56 = por %p54, %p55
    %p57 = scmp.ne.s32.totalorder %s49, %s51
    %p58 = scmp.eq.s32.totalorder %s20, 1
    %p59 = por %p57, %p58
    %p60 = scmp.ne.s32.totalorder %s51, %s52
    %p61 = scmp.eq.s32.totalorder %s20, 0
    %p62 = por %p60, %p61
    %p63 = scmp.ne.s32.totalorder %s51, %s52
    %p64 = scmp.eq.s32.totalorder %s21, 1
    %p65 = por %p63, %p64
    %p67 = scmp.ne.s32.totalorder %s52, %s66
    %p68 = scmp.eq.s32.totalorder %s21, 0
    %p69 = por %p67, %p68
    %s71 = sadd.s32 %s70, 1
    %p74 = scmp.eq.s32.totalorder %s15, 1
    %p75 = scmp.ne.s32.totalorder %s70, %s72
    %p76 = scmp.eq.s32.totalorder %s15, 0
    %p77 = por %p75, %p76
    %p78 = scmp.ne.s32.totalorder %s70, %s72
    %p79 = scmp.eq.s32.totalorder %s20, 1
    %p80 = por %p78, %p79
    %p81 = scmp.ne.s32.totalorder %s72, %s73
    %p82 = scmp.eq.s32.totalorder %s20, 0
    %p83 = por %p81, %p82
    %p84 = scmp.ne.s32.totalorder %s72, %s73
    %p85 = scmp.eq.s32.totalorder %s21, 1
    %p86 = por %p84, %p85
    %p88 = scmp.ne.s32.totalorder %s73, %s87
    %p89 = scmp.eq.s32.totalorder %s21, 0
    %p90 = por %p88, %p89
    %s92 = sadd.s32 %s91, 1
    %p95 = scmp.eq.s32.totalorder %s15, 1
    %p96 = scmp.ne.s32.totalorder %s91, %s93
    %p97 = scmp.eq.s32.totalorder %s15, 0
    %p98 = por %p96, %p97
    %p99 = scmp.ne.s32.totalorder %s91, %s93
    %p100 = scmp.eq.s32.totalorder %s20, 1
    %p101 = por %p99, %p100
    %p102 = scmp.ne.s32.totalorder %s93, %s94
    %p103 = scmp.eq.s32.totalorder %s20, 0
    %p104 = por %p102, %p103
    %p105 = scmp.ne.s32.totalorder %s93, %s94
    %p106 = scmp.eq.s32.totalorder %s21, 1
    %p107 = por %p105, %p106
    %p109 = scmp.ne.s32.totalorder %s94, %s108
    %p110 = scmp.eq.s32.totalorder %s21, 0
    %p111 = por %p109, %p110
    %s113 = sadd.s32 %s112, 1
    %p116 = scmp.eq.s32.totalorder %s15, 1
    %p117 = scmp.ne.s32.totalorder %s112, %s114
    %p118 = scmp.eq.s32.totalorder %s15, 0
    %p119 = por %p117, %p118
    %p120 = scmp.ne.s32.totalorder %s112, %s114
    %p121 = scmp.eq.s32.totalorder %s20, 1
    %p122 = por %p120, %p121
    %p123 = scmp.ne.s32.totalorder %s114, %s115
    %p124 = scmp.eq.s32.totalorder %s20, 0
    %p125 = por %p123, %p124
    %p126 = scmp.ne.s32.totalorder %s114, %s115
    %p127 = scmp.eq.s32.totalorder %s21, 1
    %p128 = por %p126, %p127
    %p130 = scmp.ne.s32.totalorder %s115, %s129
    %p131 = scmp.eq.s32.totalorder %s21, 0
    %p132 = por %p130, %p131
    %s134 = sadd.s32 %s133, 1
    %p137 = scmp.eq.s32.totalorder %s15, 1
    %p138 = scmp.ne.s32.totalorder %s133, %s135
    %p139 = scmp.eq.s32.totalorder %s15, 0
    %p140 = por %p138, %p139
    %p141 = scmp.ne.s32.totalorder %s133, %s135
    %p142 = scmp.eq.s32.totalorder %s20, 1
    %p143 = por %p141, %p142
    %p144 = scmp.ne.s32.totalorder %s135, %s136
    %p145 = scmp.eq.s32.totalorder %s20, 0
    %p146 = por %p144, %p145
    %p147 = scmp.ne.s32.totalorder %s135, %s136
    %p148 = scmp.eq.s32.totalorder %s21, 1
    %p149 = por %p147, %p148
    %p151 = scmp.ne.s32.totalorder %s136, %s150
    %p152 = scmp.eq.s32.totalorder %s21, 0
    %p153 = por %p151, %p152
    %s155 = sadd.s32 %s154, 1
    %p158 = scmp.eq.s32.totalorder %s15, 1
    %p159 = scmp.ne.s32.totalorder %s154, %s156
    %p160 = scmp.eq.s32.totalorder %s15, 0
    %p161 = por %p159, %p160
    %p162 = scmp.ne.s32.totalorder %s154, %s156
    %p163 = scmp.eq.s32.totalorder %s20, 1
    %p164 = por %p162, %p163
    %p165 = scmp.ne.s32.totalorder %s156, %s157
    %p166 = scmp.eq.s32.totalorder %s20, 0
    %p167 = por %p165, %p166
    %p168 = scmp.ne.s32.totalorder %s156, %s157
    %p169 = scmp.eq.s32.totalorder %s21, 1
    %p170 = por %p168, %p169
    %p172 = scmp.ne.s32.totalorder %s157, %s171
    %p173 = scmp.eq.s32.totalorder %s21, 0
    %p174 = por %p172, %p173
    %s176 = sadd.s32 %s175, 1
    %p179 = scmp.eq.s32.totalorder %s15, 1
    %p180 = scmp.ne.s32.totalorder %s175, %s177
    %p181 = scmp.eq.s32.totalorder %s15, 0
    %p182 = por %p180, %p181
    %p183 = scmp.ne.s32.totalorder %s175, %s177
    %p184 = scmp.eq.s32.totalorder %s20, 1
    %p185 = por %p183, %p184
    %p186 = scmp.ne.s32.totalorder %s177, %s178
    %p187 = scmp.eq.s32.totalorder %s20, 0
    %p188 = por %p186, %p187
    %p189 = scmp.ne.s32.totalorder %s177, %s178
    %p190 = scmp.eq.s32.totalorder %s21, 1
    %p191 = por %p189, %p190
    %p193 = scmp.ne.s32.totalorder %s178, %s192
    %p194 = scmp.eq.s32.totalorder %s21, 0
    %p195 = por %p193, %p194
    %s197 = sadd.s32 %s196, 1
    %p200 = scmp.eq.s32.totalorder %s15, 1
    %p201 = scmp.ne.s32.totalorder %s196, %s198
    %p202 = scmp.eq.s32.totalorder %s15, 0
    %p203 = por %p201, %p202
    %p204 = scmp.ne.s32.totalorder %s196, %s198
    %p205 = scmp.eq.s32.totalorder %s20, 1
    %p206 = por %p204, %p205
    %p207 = scmp.ne.s32.totalorder %s198, %s199
    %p208 = scmp.eq.s32.totalorder %s20, 0
    %p209 = por %p207, %p208
    %p210 = scmp.ne.s32.totalorder %s198, %s199
    %p211 = scmp.eq.s32.totalorder %s21, 1
    %p212 = por %p210, %p211
    %p214 = scmp.ne.s32.totalorder %s199, %s213
    %p215 = scmp.eq.s32.totalorder %s21, 0
    %p216 = por %p214, %p215
    %s217 = ssub.s32 %s15, %s22
    %p218 = scmp.eq.s32.totalorder %s217, 0
    %s220 = sadd.s32 %s219, 1
    %s221 = scalar_select %p218, %s219, %s220
    %p224 = pneg %p218
    %p225 = scmp.eq.s32.totalorder %s15, 1
    %p226 = por %p224, %p225
    %p227 = scmp.ne.s32.totalorder %s219, %s222
    %p228 = scmp.eq.s32.totalorder %s15, 0
    %p229 = por %p227, %p228
    %p230 = scmp.ne.s32.totalorder %s219, %s222
    %p231 = scmp.eq.s32.totalorder %s20, 1
    %p232 = por %p230, %p231
    %p233 = scmp.ne.s32.totalorder %s222, %s223
    %p234 = scmp.eq.s32.totalorder %s20, 0
    %p235 = por %p233, %p234
    %p236 = scmp.ne.s32.totalorder %s222, %s223
    %p237 = scmp.eq.s32.totalorder %s21, 1
    %p238 = por %p236, %p237
    %p240 = scmp.ne.s32.totalorder %s223, %s239
    %p241 = scmp.eq.s32.totalorder %s21, 0
    %p242 = por %p240, %p241
    %p243 = scmp.le.s32.totalorder 1, %s15
    %p244 = scmp.lt.s32.totalorder %s15, 3
    %p245 = pnand %p243, %p244
    %p246 = pneg %p245
    // Predicated region
    $region9: #{node_forward.1} parent=5 // pred_check
      _
    $region10: #{node_forward.1} parent=5 // pred_check_branch
      %248 = sbr.rel (%p245) target = $region12
    $region11: #{node_forward.1} parent=5 // pred_region
      %s249 = ssub.s32 %s15, 1
      // Predicated region
      $region13: #{node_forward.1} parent=11 // pred_check
        %p250 = pneg %p62
      $region14: #{node_forward.1} parent=11 // pred_check_branch
        %252 = sbr.rel (%p250) target = $region16
      $region15: #{node_forward.1} parent=11 // pred_region
        _
      $region16: #{node_forward.1} parent=11 // pred_fallthru
        _
      // Predicated region
      $region17: #{node_forward.1} parent=11 // pred_check
        %p253 = pneg %p83
      $region18: #{node_forward.1} parent=11 // pred_check_branch
        %255 = sbr.rel (%p253) target = $region20
      $region19: #{node_forward.1} parent=11 // pred_region
        _
      $region20: #{node_forward.1} parent=11 // pred_fallthru
        _
      // Predicated region
      $region21: #{node_forward.1} parent=11 // pred_check
        %p256 = pneg %p104
      $region22: #{node_forward.1} parent=11 // pred_check_branch
        %258 = sbr.rel (%p256) target = $region24
      $region23: #{node_forward.1} parent=11 // pred_region
        _
      $region24: #{node_forward.1} parent=11 // pred_fallthru
        _
      // Predicated region
      $region25: #{node_forward.1} parent=11 // pred_check
        %p259 = pneg %p125
      $region26: #{node_forward.1} parent=11 // pred_check_branch
        %261 = sbr.rel (%p259) target = $region28
      $region27: #{node_forward.1} parent=11 // pred_region
        _
      $region28: #{node_forward.1} parent=11 // pred_fallthru
        _
      // Predicated region
      $region29: #{node_forward.1} parent=11 // pred_check
        %p262 = pneg %p146
      $region30: #{node_forward.1} parent=11 // pred_check_branch
        %264 = sbr.rel (%p262) target = $region32
      $region31: #{node_forward.1} parent=11 // pred_region
        _
      $region32: #{node_forward.1} parent=11 // pred_fallthru
        _
      // Predicated region
      $region33: #{node_forward.1} parent=11 // pred_check
        %p265 = pneg %p167
      $region34: #{node_forward.1} parent=11 // pred_check_branch
        %267 = sbr.rel (%p265) target = $region36
      $region35: #{node_forward.1} parent=11 // pred_region
        _
      $region36: #{node_forward.1} parent=11 // pred_fallthru
        _
      // Predicated region
      $region37: #{node_forward.1} parent=11 // pred_check
        %p268 = pneg %p188
      $region38: #{node_forward.1} parent=11 // pred_check_branch
        %270 = sbr.rel (%p268) target = $region40
      $region39: #{node_forward.1} parent=11 // pred_region
        _
      $region40: #{node_forward.1} parent=11 // pred_fallthru
        _
      // Predicated region
      $region41: #{node_forward.1} parent=11 // pred_check
        %p271 = pneg %p209
      $region42: #{node_forward.1} parent=11 // pred_check_branch
        %273 = sbr.rel (%p271) target = $region44
      $region43: #{node_forward.1} parent=11 // pred_region
        _
      $region44: #{node_forward.1} parent=11 // pred_fallthru
        _
    $region12: #{node_forward.1} parent=5 // pred_fallthru
      _
    %p274 = scmp.lt.s32.totalorder %s15, 2
    // Predicated region
    $region45: #{node_forward.1} parent=5 // pred_check
      %p275 = pneg %p274
    $region46: #{node_forward.1} parent=5 // pred_check_branch
      %277 = sbr.rel (%p275) target = $region48
    $region47: #{node_forward.1} parent=5 // pred_region
      // Predicated region
      $region49: #{node_forward.1} parent=47 // pred_check
        %p278 = pneg %p35
      $region50: #{node_forward.1} parent=47 // pred_check_branch
        %280 = sbr.rel (%p278) target = $region52
      $region51: #{node_forward.1} parent=47 // pred_region
        %p281 = scmp.lt.s32.totalorder %s15, 1
        %s282 = scalar_select %p281, %s15, 1
        %s283 = smul.addr %s282, 2
        %s284 = smul.addr %s283, 4
        %s285 = scalar_lea.vmem %s0, %s284
      $region52: #{node_forward.1} parent=47 // pred_fallthru
        _
    $region48: #{node_forward.1} parent=5 // pred_fallthru
      _
    %p286 = scmp.le.s32.totalorder 1, %s15
    %p287 = scmp.lt.s32.totalorder %s15, 3
    %p288 = pnand %p286, %p287
    %p289 = pneg %p288
    // Predicated region
    $region53: #{node_forward.1} parent=5 // pred_check
      _
    $region54: #{node_forward.1} parent=5 // pred_check_branch
      %291 = sbr.rel (%p288) target = $region56
    $region55: #{node_forward.1} parent=5 // pred_region
      %s292 = ssub.s32 %s15, 1
      %p293 = scmp.lt.s32.totalorder %s20, 1
      %s294 = scalar_select %p293, %s20, 1
      %s295 = smul.addr %s294, 2
      %s296 = smul.addr %s295, 4
      %s297 = scalar_lea.vmem %s0, %s296
      %p298 = pneg %p41
      %p299 = pneg %p38
      %p300 = pneg %p62
      %p301 = pneg %p59
      %p302 = pneg %p83
      %p303 = pneg %p80
      %p304 = pneg %p104
      %p305 = pneg %p101
      %p306 = pneg %p125
      %p307 = pneg %p122
      %p308 = pneg %p146
      %p309 = pneg %p143
      %p310 = pneg %p167
      %p311 = pneg %p164
      %p312 = pneg %p188
      %p313 = pneg %p185
      %p314 = pneg %p209
      %p315 = pneg %p206
      %p316 = pneg %p235
      %p317 = pneg %p232
      %p318 = scmp.lt.s32.totalorder %s20, 1
      %s319 = scalar_select %p318, %s20, 1
      %s320 = smul.addr %s319, 2
      %s321 = smul.addr %s320, 4
      %s322 = scalar_lea.vmem %s9, %s321
      %p323 = scmp.lt.s32.totalorder %s20, 1
      %s324 = scalar_select %p323, %s20, 1
      %s325 = smul.addr %s324, 2
      %s326 = smul.addr %s325, 4
      %s327 = scalar_lea.vmem %s0, %s326
      %p328 = scmp.lt.s32.totalorder %s20, 1
      %s329 = scalar_select %p328, %s20, 1
      %s330 = smul.addr %s329, 2
      %s331 = smul.addr %s330, 4
      %s332 = scalar_lea.vmem %s9, %s331
      %v333 = vld [vmem:[%s327] sm:$0xff]
      %v334 = vld [vmem:[%s1] sm:$0xff]
      %v335 = vld [vmem:[%s1 + $0x8] sm:$0xff]
      %v336 = vld [vmem:[%s1 + $0x10] sm:$0x1]
      %v337 = vld [vmem:[%s1 + $0x18] sm:$0x1]
      %v338 = vld [vmem:[%s2] sm:$0xff]
      %v339 = vld [vmem:[%s2 + $0x8] sm:$0xff]
      %v340 = vld [vmem:[%s2 + $0x10] sm:$0xff]
      %v341 = vld [vmem:[%s2 + $0x18] sm:$0xff]
      %v342 = vld [vmem:[%s2 + $0x20] sm:$0xff]
      %v343 = vld [vmem:[%s2 + $0x28] sm:$0xff]
      %v344 = vld [vmem:[%s2 + $0x30] sm:$0xff]
      %v345 = vld [vmem:[%s2 + $0x38] sm:$0xff]
      %v346 = vld [vmem:[%s2 + $0x40] sm:$0xff]
      %v347 = vld [vmem:[%s2 + $0x48] sm:$0xff]
      %v348 = vld [vmem:[%s2 + $0x50] sm:$0xff]
      %v349 = vld [vmem:[%s2 + $0x58] sm:$0xff]
      %v350 = vld [vmem:[%s2 + $0x60] sm:$0xff]
      %v351 = vld [vmem:[%s2 + $0x68] sm:$0xff]
      %v352 = vld [vmem:[%s2 + $0x70] sm:$0xff]
      %v353 = vld [vmem:[%s2 + $0x78] sm:$0xff]
      %v354 = vld [vmem:[%s2 + $0x80] sm:$0xff]
      %v355 = vld [vmem:[%s2 + $0x88] sm:$0xff]
      %v356 = vld [vmem:[%s2 + $0x90] sm:$0xff]
      %v357 = vld [vmem:[%s2 + $0x98] sm:$0xff]
      %v358 = vld [vmem:[%s2 + $0xa0] sm:$0xff]
      %v359 = vld [vmem:[%s2 + $0xa8] sm:$0xff]
      %v360 = vld [vmem:[%s2 + $0xb0] sm:$0xff]
      %v361 = vld [vmem:[%s2 + $0xb8] sm:$0xff]
      %v362 = vld [vmem:[%s2 + $0xc0] sm:$0xff]
      %v363 = vld [vmem:[%s2 + $0xc8] sm:$0xff]
      %v364 = vld [vmem:[%s2 + $0xd0] sm:$0xff]
      %v365 = vld [vmem:[%s2 + $0xd8] sm:$0xff]
      %v366 = vld [vmem:[%s2 + $0xe0] sm:$0xff]
      %v367 = vld [vmem:[%s2 + $0xe8] sm:$0xff]
      %v368 = vld [vmem:[%s2 + $0xf0] sm:$0xff]
      %v369 = vld [vmem:[%s2 + $0xf8] sm:$0xff]
      %v370 = vld [vmem:[%s3] sm:$0xf]
      %v371 = vld [vmem:[%s4] sm:$0xf]
      %v373 = vcombine.high %v333, %v333
      %375 = vmatprep.subr.mxu0 0.0
      %376 = vmatpush1.msra.mxu0 %v338
      %377 = vmatprep.subr.mxu0 0.0
      %378 = vmatpush1.msra.mxu0 %v339
      %379 = vmatprep.subr.mxu0 0.0
      %380 = vmatpush1.msra.mxu0 %v340
      %381 = vmatprep.subr.mxu0 0.0
      %382 = vmatpush1.msra.mxu0 %v341
      %383 = vmatprep.subr.mxu0 0.0
      %384 = vmatpush1.msra.mxu0 %v342
      %385 = vmatprep.subr.mxu0 0.0
      %386 = vmatpush1.msra.mxu0 %v343
      %387 = vmatprep.subr.mxu0 0.0
      %388 = vmatpush1.msra.mxu0 %v344
      %389 = vmatprep.subr.mxu0 0.0
      %390 = vmatpush1.msra.mxu0 %v345
      %391 = vmatprep.subr.mxu0 0.0
      %392 = vmatpush1.msra.mxu0 %v346
      %393 = vmatprep.subr.mxu0 0.0
      %394 = vmatpush1.msra.mxu0 %v347
      %395 = vmatprep.subr.mxu0 0.0
      %396 = vmatpush1.msra.mxu0 %v348
      %397 = vmatprep.subr.mxu0 0.0
      %398 = vmatpush1.msra.mxu0 %v349
      %399 = vmatprep.subr.mxu0 0.0
      %400 = vmatpush1.msra.mxu0 %v350
      %401 = vmatprep.subr.mxu0 0.0
      %402 = vmatpush1.msra.mxu0 %v351
      %403 = vmatprep.subr.mxu0 0.0
      %404 = vmatpush1.msra.mxu0 %v352
      %405 = vmatprep.subr.mxu0 0.0
      %406 = vmatpush1.msra.mxu0 %v353
      %407 = vmatprep.subr.mxu0 0.0
      %408 = vmatpush1.msra.mxu0 %v354
      %409 = vmatprep.subr.mxu0 0.0
      %410 = vmatpush1.msra.mxu0 %v355
      %411 = vmatprep.subr.mxu0 0.0
      %412 = vmatpush1.msra.mxu0 %v356
      %413 = vmatprep.subr.mxu0 0.0
      %414 = vmatpush1.msra.mxu0 %v357
      %415 = vmatprep.subr.mxu0 0.0
      %416 = vmatpush1.msra.mxu0 %v358
      %417 = vmatprep.subr.mxu0 0.0
      %418 = vmatpush1.msra.mxu0 %v359
      %419 = vmatprep.subr.mxu0 0.0
      %420 = vmatpush1.msra.mxu0 %v360
      %421 = vmatprep.subr.mxu0 0.0
      %422 = vmatpush1.msra.mxu0 %v361
      %423 = vmatprep.subr.mxu0 0.0
      %424 = vmatpush1.msra.mxu0 %v362
      %425 = vmatprep.subr.mxu0 0.0
      %426 = vmatpush1.msra.mxu0 %v363
      %427 = vmatprep.subr.mxu0 0.0
      %428 = vmatpush1.msra.mxu0 %v364
      %429 = vmatprep.subr.mxu0 0.0
      %430 = vmatpush1.msra.mxu0 %v365
      %431 = vmatprep.subr.mxu0 0.0
      %432 = vmatpush1.msra.mxu0 %v366
      %433 = vmatprep.subr.mxu0 0.0
      %434 = vmatpush1.msra.mxu0 %v367
      %435 = vmatprep.subr.mxu0 0.0
      %436 = vmatpush1.msra.mxu0 %v368
      %437 = vmatprep.subr.mxu0 0.0
      %438 = vmatpush1.msra.mxu0 %v369
      %439 = vmatprep.mubr.f32.mxu0 %v373
      %440 = vmatmul.mubr.f32.gmra.mrb[0].mxu0 %v333
      %v441 = vpop.f32.mrb[0].mxu0
      %v442 = vadd.f32 0.0, %v441
      %v443 = vpop.f32.mrb[0].mxu0
      %444 = vdwg.mxu0
      %v445 = vmul.f32 %v442, 0.00390625
      %vm446 = vcmask 7168
      %v448 = vsel %vm446, %v445, 0
      %v451 = vsel %vm446, %v338, 0
      %v454 = vsel %vm446, %v339, 0
      %v457 = vsel %vm446, %v340, 0
      %v460 = vsel %vm446, %v341, 0
      %v463 = vsel %vm446, %v342, 0
      %v466 = vsel %vm446, %v343, 0
      %v469 = vsel %vm446, %v344, 0
      %v472 = vsel %vm446, %v345, 0
      %v475 = vsel %vm446, %v346, 0
      %v478 = vsel %vm446, %v347, 0
      %v481 = vsel %vm446, %v348, 0
      %v484 = vsel %vm446, %v349, 0
      %v487 = vsel %vm446, %v350, 0
      %v490 = vsel %vm446, %v351, 0
      %v493 = vsel %vm446, %v352, 0
      %v496 = vsel %vm446, %v353, 0
      %v499 = vsel %vm446, %v354, 0
      %v502 = vsel %vm446, %v355, 0
      %v505 = vsel %vm446, %v356, 0
      %v508 = vsel %vm446, %v357, 0
      %v511 = vsel %vm446, %v358, 0
      %v514 = vsel %vm446, %v359, 0
      %v517 = vsel %vm446, %v360, 0
      %v520 = vsel %vm446, %v361, 0
      %v523 = vsel %vm446, %v362, 0
      %v526 = vsel %vm446, %v363, 0
      %v529 = vsel %vm446, %v364, 0
      %v532 = vsel %vm446, %v365, 0
      %v535 = vsel %vm446, %v366, 0
      %v538 = vsel %vm446, %v367, 0
      %v541 = vsel %vm446, %v368, 0
      %v544 = vsel %vm446, %v369, 0
      %546 = vmatprep.subr.mxu0 0.0
      %547 = vmatpush1.xpose.msra.mxu0 %v451
      %548 = vmatprep.subr.mxu0 0.0
      %549 = vmatpush1.xpose.msra.mxu0 %v454
      %550 = vmatprep.subr.mxu0 0.0
      %551 = vmatpush1.xpose.msra.mxu0 %v457
      %552 = vmatprep.subr.mxu0 0.0
      %553 = vmatpush1.xpose.msra.mxu0 %v460
      %554 = vmatprep.subr.mxu0 0.0
      %555 = vmatpush1.xpose.msra.mxu0 %v463
      %556 = vmatprep.subr.mxu0 0.0
      %557 = vmatpush1.xpose.msra.mxu0 %v466
      %558 = vmatprep.subr.mxu0 0.0
      %559 = vmatpush1.xpose.msra.mxu0 %v469
      %560 = vmatprep.subr.mxu0 0.0
      %561 = vmatpush1.xpose.msra.mxu0 %v472
      %562 = vmatprep.subr.mxu0 0.0
      %563 = vmatpush1.xpose.msra.mxu0 %v475
      %564 = vmatprep.subr.mxu0 0.0
      %565 = vmatpush1.xpose.msra.mxu0 %v478
      %566 = vmatprep.subr.mxu0 0.0
      %567 = vmatpush1.xpose.msra.mxu0 %v481
      %568 = vmatprep.subr.mxu0 0.0
      %569 = vmatpush1.xpose.msra.mxu0 %v484
      %570 = vmatprep.subr.mxu0 0.0
      %571 = vmatpush1.xpose.msra.mxu0 %v487
      %572 = vmatprep.subr.mxu0 0.0
      %573 = vmatpush1.xpose.msra.mxu0 %v490
      %574 = vmatprep.subr.mxu0 0.0
      %575 = vmatpush1.xpose.msra.mxu0 %v493
      %576 = vmatprep.subr.mxu0 0.0
      %577 = vmatpush1.xpose.msra.mxu0 %v496
      %578 = vmatprep.subr.mxu0 0.0
      %579 = vmatpush1.xpose.msra.mxu0 %v499
      %580 = vmatprep.subr.mxu0 0.0
      %581 = vmatpush1.xpose.msra.mxu0 %v502
      %582 = vmatprep.subr.mxu0 0.0
      %583 = vmatpush1.xpose.msra.mxu0 %v505
      %584 = vmatprep.subr.mxu0 0.0
      %585 = vmatpush1.xpose.msra.mxu0 %v508
      %586 = vmatprep.subr.mxu0 0.0
      %587 = vmatpush1.xpose.msra.mxu0 %v511
      %588 = vmatprep.subr.mxu0 0.0
      %589 = vmatpush1.xpose.msra.mxu0 %v514
      %590 = vmatprep.subr.mxu0 0.0
      %591 = vmatpush1.xpose.msra.mxu0 %v517
      %592 = vmatprep.subr.mxu0 0.0
      %593 = vmatpush1.xpose.msra.mxu0 %v520
      %594 = vmatprep.subr.mxu0 0.0
      %595 = vmatpush1.xpose.msra.mxu0 %v523
      %596 = vmatprep.subr.mxu0 0.0
      %597 = vmatpush1.xpose.msra.mxu0 %v526
      %598 = vmatprep.subr.mxu0 0.0
      %599 = vmatpush1.xpose.msra.mxu0 %v529
      %600 = vmatprep.subr.mxu0 0.0
      %601 = vmatpush1.xpose.msra.mxu0 %v532
      %602 = vmatprep.subr.mxu0 0.0
      %603 = vmatpush1.xpose.msra.mxu0 %v535
      %604 = vmatprep.subr.mxu0 0.0
      %605 = vmatpush1.xpose.msra.mxu0 %v538
      %606 = vmatprep.subr.mxu0 0.0
      %607 = vmatpush1.xpose.msra.mxu0 %v541
      %608 = vmatprep.subr.mxu0 0.0
      %609 = vmatpush1.xpose.msra.mxu0 %v544
      %610 = vmatprep.mubr.f32.mxu0 0.0
      %611 = vmatmul.mubr.f32.gmra.mrb[0].mxu0 %v448
      %v612 = vpop.f32.mrb[0].mxu0
      %v613 = vadd.f32 0.0, %v612
      %v614 = vpop.f32.mrb[0].mxu0
      %v615 = vadd.f32 0.0, %v614
      %616 = vdwg.mxu0
      %v619 = vcombine.low %v613, %v615
      %v621 = vsub.f32 %v333, %v619
      %v622 = vmul.f32 %v621, %v621
      %v624 = vcombine.high %v622, %v622
      %626 = vmatprep.subr.mxu0 0.0
      %627 = vmatpush1.msra.mxu0 %v338
      %628 = vmatprep.subr.mxu0 0.0
      %629 = vmatpush1.msra.mxu0 %v339
      %630 = vmatprep.subr.mxu0 0.0
      %631 = vmatpush1.msra.mxu0 %v340
      %632 = vmatprep.subr.mxu0 0.0
      %633 = vmatpush1.msra.mxu0 %v341
      %634 = vmatprep.subr.mxu0 0.0
      %635 = vmatpush1.msra.mxu0 %v342
      %636 = vmatprep.subr.mxu0 0.0
      %637 = vmatpush1.msra.mxu0 %v343
      %638 = vmatprep.subr.mxu0 0.0
      %639 = vmatpush1.msra.mxu0 %v344
      %640 = vmatprep.subr.mxu0 0.0
      %641 = vmatpush1.msra.mxu0 %v345
      %642 = vmatprep.subr.mxu0 0.0
      %643 = vmatpush1.msra.mxu0 %v346
      %644 = vmatprep.subr.mxu0 0.0
      %645 = vmatpush1.msra.mxu0 %v347
      %646 = vmatprep.subr.mxu0 0.0
      %647 = vmatpush1.msra.mxu0 %v348
      %648 = vmatprep.subr.mxu0 0.0
      %649 = vmatpush1.msra.mxu0 %v349
      %650 = vmatprep.subr.mxu0 0.0
      %651 = vmatpush1.msra.mxu0 %v350
      %652 = vmatprep.subr.mxu0 0.0
      %653 = vmatpush1.msra.mxu0 %v351
      %654 = vmatprep.subr.mxu0 0.0
      %655 = vmatpush1.msra.mxu0 %v352
      %656 = vmatprep.subr.mxu0 0.0
      %657 = vmatpush1.msra.mxu0 %v353
      %658 = vmatprep.subr.mxu0 0.0
      %659 = vmatpush1.msra.mxu0 %v354
      %660 = vmatprep.subr.mxu0 0.0
      %661 = vmatpush1.msra.mxu0 %v355
      %662 = vmatprep.subr.mxu0 0.0
      %663 = vmatpush1.msra.mxu0 %v356
      %664 = vmatprep.subr.mxu0 0.0
      %665 = vmatpush1.msra.mxu0 %v357
      %666 = vmatprep.subr.mxu0 0.0
      %667 = vmatpush1.msra.mxu0 %v358
      %668 = vmatprep.subr.mxu0 0.0
      %669 = vmatpush1.msra.mxu0 %v359
      %670 = vmatprep.subr.mxu0 0.0
      %671 = vmatpush1.msra.mxu0 %v360
      %672 = vmatprep.subr.mxu0 0.0
      %673 = vmatpush1.msra.mxu0 %v361
      %674 = vmatprep.subr.mxu0 0.0
      %675 = vmatpush1.msra.mxu0 %v362
      %676 = vmatprep.subr.mxu0 0.0
      %677 = vmatpush1.msra.mxu0 %v363
      %678 = vmatprep.subr.mxu0 0.0
      %679 = vmatpush1.msra.mxu0 %v364
      %680 = vmatprep.subr.mxu0 0.0
      %681 = vmatpush1.msra.mxu0 %v365
      %682 = vmatprep.subr.mxu0 0.0
      %683 = vmatpush1.msra.mxu0 %v366
      %684 = vmatprep.subr.mxu0 0.0
      %685 = vmatpush1.msra.mxu0 %v367
      %686 = vmatprep.subr.mxu0 0.0
      %687 = vmatpush1.msra.mxu0 %v368
      %688 = vmatprep.subr.mxu0 0.0
      %689 = vmatpush1.msra.mxu0 %v369
      %690 = vmatprep.mubr.f32.mxu0 %v624
      %691 = vmatmul.mubr.f32.gmra.mrb[0].mxu0 %v622
      %v692 = vpop.f32.mrb[0].mxu0
      %v693 = vadd.f32 0.0, %v692
      %v694 = vpop.f32.mrb[0].mxu0
      %695 = vdwg.mxu0
      %v696 = vmul.f32 %v693, 0.00390625
      %v698 = vsel %vm446, %v696, 0
      %700 = vmatprep.subr.mxu0 0.0
      %701 = vmatpush1.xpose.msra.mxu0 %v451
      %702 = vmatprep.subr.mxu0 0.0
      %703 = vmatpush1.xpose.msra.mxu0 %v454
      %704 = vmatprep.subr.mxu0 0.0
      %705 = vmatpush1.xpose.msra.mxu0 %v457
      %706 = vmatprep.subr.mxu0 0.0
      %707 = vmatpush1.xpose.msra.mxu0 %v460
      %708 = vmatprep.subr.mxu0 0.0
      %709 = vmatpush1.xpose.msra.mxu0 %v463
      %710 = vmatprep.subr.mxu0 0.0
      %711 = vmatpush1.xpose.msra.mxu0 %v466
      %712 = vmatprep.subr.mxu0 0.0
      %713 = vmatpush1.xpose.msra.mxu0 %v469
      %714 = vmatprep.subr.mxu0 0.0
      %715 = vmatpush1.xpose.msra.mxu0 %v472
      %716 = vmatprep.subr.mxu0 0.0
      %717 = vmatpush1.xpose.msra.mxu0 %v475
      %718 = vmatprep.subr.mxu0 0.0
      %719 = vmatpush1.xpose.msra.mxu0 %v478
      %720 = vmatprep.subr.mxu0 0.0
      %721 = vmatpush1.xpose.msra.mxu0 %v481
      %722 = vmatprep.subr.mxu0 0.0
      %723 = vmatpush1.xpose.msra.mxu0 %v484
      %724 = vmatprep.subr.mxu0 0.0
      %725 = vmatpush1.xpose.msra.mxu0 %v487
      %726 = vmatprep.subr.mxu0 0.0
      %727 = vmatpush1.xpose.msra.mxu0 %v490
      %728 = vmatprep.subr.mxu0 0.0
      %729 = vmatpush1.xpose.msra.mxu0 %v493
      %730 = vmatprep.subr.mxu0 0.0
      %731 = vmatpush1.xpose.msra.mxu0 %v496
      %732 = vmatprep.subr.mxu0 0.0
      %733 = vmatpush1.xpose.msra.mxu0 %v499
      %734 = vmatprep.subr.mxu0 0.0
      %735 = vmatpush1.xpose.msra.mxu0 %v502
      %736 = vmatprep.subr.mxu0 0.0
      %737 = vmatpush1.xpose.msra.mxu0 %v505
      %738 = vmatprep.subr.mxu0 0.0
      %739 = vmatpush1.xpose.msra.mxu0 %v508
      %740 = vmatprep.subr.mxu0 0.0
      %741 = vmatpush1.xpose.msra.mxu0 %v511
      %742 = vmatprep.subr.mxu0 0.0
      %743 = vmatpush1.xpose.msra.mxu0 %v514
      %744 = vmatprep.subr.mxu0 0.0
      %745 = vmatpush1.xpose.msra.mxu0 %v517
      %746 = vmatprep.subr.mxu0 0.0
      %747 = vmatpush1.xpose.msra.mxu0 %v520
      %748 = vmatprep.subr.mxu0 0.0
      %749 = vmatpush1.xpose.msra.mxu0 %v523
      %750 = vmatprep.subr.mxu0 0.0
      %751 = vmatpush1.xpose.msra.mxu0 %v526
      %752 = vmatprep.subr.mxu0 0.0
      %753 = vmatpush1.xpose.msra.mxu0 %v529
      %754 = vmatprep.subr.mxu0 0.0
      %755 = vmatpush1.xpose.msra.mxu0 %v532
      %756 = vmatprep.subr.mxu0 0.0
      %757 = vmatpush1.xpose.msra.mxu0 %v535
      %758 = vmatprep.subr.mxu0 0.0
      %759 = vmatpush1.xpose.msra.mxu0 %v538
      %760 = vmatprep.subr.mxu0 0.0
      %761 = vmatpush1.xpose.msra.mxu0 %v541
      %762 = vmatprep.subr.mxu0 0.0
      %763 = vmatpush1.xpose.msra.mxu0 %v544
      %764 = vmatprep.mubr.f32.mxu0 0.0
      %765 = vmatmul.mubr.f32.gmra.mrb[0].mxu0 %v698
      %v766 = vpop.f32.mrb[0].mxu0
      %v767 = vadd.f32 1e-05, %v766
      %v768 = vpop.f32.mrb[0].mxu0
      %v769 = vadd.f32 1e-05, %v768
      %770 = vdwg.mxu0
      %v771 = vrsqrt.pop %v767
      %v772 = vrsqrt.pop %v769
      %v775 = vcombine.low %v771, %v772
      %v777 = vmul.f32 %v621, %v775
      %779 = vset.pattern.permute.xlu0 0
      %780 = vperm.xlu0 %779, %v370
      %v781 = vpop.permute.xlu0 %780
      %v783 = vunpack.c.l.s4 839922192
      %v784 = vunpack.c.0.s8 %v783
      %v785 = vlaneseq
      %v786 = vshrl.u32 %v785, 7
      %v787 = vsub.s32 %v784, %v786
      %v788 = vrot.slane %v781, %v787
      %v790 = vmul.f32 %v777, %v788
      %792 = vset.pattern.permute.xlu0 0
      %793 = vperm.xlu0 %792, %v371
      %v794 = vpop.permute.xlu0 %793
      %v796 = vunpack.c.l.s4 839922192
      %v797 = vunpack.c.0.s8 %v796
      %v798 = vlaneseq
      %v799 = vshrl.u32 %v798, 7
      %v800 = vsub.s32 %v797, %v799
      %v801 = vrot.slane %v794, %v800
      %v803 = vadd.f32 %v790, %v801
      %v804 = vmax.f32 %v803, 0.0
      %v806 = vcombine.high %v804, %v804
      %808 = vrot.lane.b32.xlu0 %v804, 17
      %v809 = vpop.permute.xlu0 %808
      %810 = vrot.lane.b32.xlu0 %v806, 17
      %v811 = vpop.permute.xlu0 %810
      %v812 = vlaneseq
      %v813 = vand.u32 %v812, 127
      %vm814 = vcmp.lt.s32.totalorder %v813, 17
      %v815 = vsel %vm814, %v809, %v811
      %v816 = vsel %vm814, %v811, %v809
      %v817 = vlaneseq
      %v818 = vshrl.u32 %v817, 7
      %v819 = vsub.s32 0, %v818
      %v820 = vrot.slane %v334, %v819
      %v821 = vlaneseq
      %v822 = vshrl.u32 %v821, 7
      %v823 = vsub.s32 0, %v822
      %v824 = vrot.slane %v335, %v823
      %v825 = vmul.f32 %v816, %v820
      %v826 = vmul.f32 %v815, %v824
      %827 = vst [vmem:[#allocation2] sm:$0xf] %v825
      %828 = vst [vmem:[#allocation2 + $0x8] sm:$0xf] %v826
      %829 = vrot.lane.b32.xlu0 %v804, 16
      %v830 = vpop.permute.xlu0 %829
      %831 = vrot.lane.b32.xlu0 %v806, 16
      %v832 = vpop.permute.xlu0 %831
      %vm833 = vcmp.lt.s32.totalorder %v813, 16
      %v834 = vsel %vm833, %v830, %v832
      %v835 = vsel %vm833, %v832, %v830
      %v836 = vlaneseq
      %v837 = vshrl.u32 %v836, 7
      %v838 = vsub.s32 1, %v837
      %v839 = vrot.slane %v334, %v838
      %v840 = vlaneseq
      %v841 = vshrl.u32 %v840, 7
      %v842 = vsub.s32 1, %v841
      %v843 = vrot.slane %v335, %v842
      %v844 = vmul.f32 %v835, %v839
      %v845 = vmul.f32 %v834, %v843
      %v848 = vrot.slane %v844, 4
      %v849 = vrot.slane %v845, 4
      %852 = vst [vmem:[#allocation2] sm:$0xf0] %v848
      %853 = vst [vmem:[#allocation2 + $0x8] sm:$0xf0] %v849
      %854 = vrot.lane.b32.xlu0 %v804, 15
      %v855 = vpop.permute.xlu0 %854
      %856 = vrot.lane.b32.xlu0 %v806, 15
      %v857 = vpop.permute.xlu0 %856
      %vm858 = vcmp.lt.s32.totalorder %v813, 15
      %v859 = vsel %vm858, %v855, %v857
      %v860 = vsel %vm858, %v857, %v855
      %v861 = vlaneseq
      %v862 = vshrl.u32 %v861, 7
      %v863 = vsub.s32 2, %v862
      %v864 = vrot.slane %v334, %v863
      %v865 = vlaneseq
      %v866 = vshrl.u32 %v865, 7
      %v867 = vsub.s32 2, %v866
      %v868 = vrot.slane %v335, %v867
      %v869 = vmul.f32 %v860, %v864
      %v870 = vmul.f32 %v859, %v868
      %871 = vst [vmem:[#allocation2 + $0x10] sm:$0xf] %v869
      %872 = vst [vmem:[#allocation2 + $0x18] sm:$0xf] %v870
      %873 = vrot.lane.b32.xlu0 %v804, 1
      %v874 = vpop.permute.xlu0 %873
      %875 = vrot.lane.b32.xlu0 %v806, 1
      %v876 = vpop.permute.xlu0 %875
      %vm877 = vcmp.lt.s32.totalorder %v813, 1
      %v878 = vsel %vm877, %v874, %v876
      %v879 = vsel %vm877, %v876, %v874
      %v880 = vlaneseq
      %v881 = vshrl.u32 %v880, 7
      %v882 = vsub.s32 3, %v881
      %v883 = vrot.slane %v334, %v882
      %v884 = vlaneseq
      %v885 = vshrl.u32 %v884, 7
      %v886 = vsub.s32 3, %v885
      %v887 = vrot.slane %v335, %v886
      %v888 = vmul.f32 %v879, %v883
      %v889 = vmul.f32 %v878, %v887
      %v892 = vrot.slane %v888, 4
      %v893 = vrot.slane %v889, 4
      %896 = vst [vmem:[#allocation2 + $0x10] sm:$0xf0] %v892
      %897 = vst [vmem:[#allocation2 + $0x18] sm:$0xf0] %v893
      %898 = vst [vmem:[#allocation2 + $0x20] sm:$0xf] %v804
      %899 = vst [vmem:[#allocation2 + $0x28] sm:$0xf] %v806
      %900 = vrot.lane.b32.xlu0 %v804, 127
      %v901 = vpop.permute.xlu0 %900
      %902 = vrot.lane.b32.xlu0 %v806, 127
      %v903 = vpop.permute.xlu0 %902
      %vm904 = vcmp.lt.s32.totalorder %v813, 127
      %v905 = vsel %vm904, %v901, %v903
      %v906 = vsel %vm904, %v903, %v901
      %v907 = vlaneseq
      %v908 = vshrl.u32 %v907, 7
      %v909 = vsub.s32 5, %v908
      %v910 = vrot.slane %v334, %v909
      %v911 = vlaneseq
      %v912 = vshrl.u32 %v911, 7
      %v913 = vsub.s32 5, %v912
      %v914 = vrot.slane %v335, %v913
      %v915 = vmul.f32 %v905, %v910
      %v916 = vmul.f32 %v906, %v914
      %v919 = vrot.slane %v915, 4
      %v920 = vrot.slane %v916, 4
      %923 = vst [vmem:[#allocation2 + $0x20] sm:$0xf0] %v919
      %924 = vst [vmem:[#allocation2 + $0x28] sm:$0xf0] %v920
      %925 = vrot.lane.b32.xlu0 %v804, 113
      %v926 = vpop.permute.xlu0 %925
      %927 = vrot.lane.b32.xlu0 %v806, 113
      %v928 = vpop.permute.xlu0 %927
      %vm929 = vcmp.lt.s32.totalorder %v813, 113
      %v930 = vsel %vm929, %v926, %v928
      %v931 = vsel %vm929, %v928, %v926
      %v932 = vlaneseq
      %v933 = vshrl.u32 %v932, 7
      %v934 = vsub.s32 6, %v933
      %v935 = vrot.slane %v334, %v934
      %v936 = vlaneseq
      %v937 = vshrl.u32 %v936, 7
      %v938 = vsub.s32 6, %v937
      %v939 = vrot.slane %v335, %v938
      %v940 = vmul.f32 %v930, %v935
      %v941 = vmul.f32 %v931, %v939
      %942 = vst [vmem:[#allocation2 + $0x30] sm:$0xf] %v940
      %943 = vst [vmem:[#allocation2 + $0x38] sm:$0xf] %v941
      %944 = vrot.lane.b32.xlu0 %v804, 112
      %v945 = vpop.permute.xlu0 %944
      %946 = vrot.lane.b32.xlu0 %v806, 112
      %v947 = vpop.permute.xlu0 %946
      %vm948 = vcmp.lt.s32.totalorder %v813, 112
      %v949 = vsel %vm948, %v945, %v947
      %v950 = vsel %vm948, %v947, %v945
      %v951 = vlaneseq
      %v952 = vshrl.u32 %v951, 7
      %v953 = vsub.s32 7, %v952
      %v954 = vrot.slane %v334, %v953
      %v955 = vlaneseq
      %v956 = vshrl.u32 %v955, 7
      %v957 = vsub.s32 7, %v956
      %v958 = vrot.slane %v335, %v957
      %v959 = vmul.f32 %v949, %v954
      %v960 = vmul.f32 %v950, %v958
      %v963 = vrot.slane %v959, 4
      %v964 = vrot.slane %v960, 4
      %967 = vst [vmem:[#allocation2 + $0x30] sm:$0xf0] %v963
      %968 = vst [vmem:[#allocation2 + $0x38] sm:$0xf0] %v964
      %969 = vrot.lane.b32.xlu0 %v804, 111
      %v970 = vpop.permute.xlu0 %969
      %971 = vrot.lane.b32.xlu0 %v806, 111
      %v972 = vpop.permute.xlu0 %971
      %vm973 = vcmp.lt.s32.totalorder %v813, 111
      %v974 = vsel %vm973, %v970, %v972
      %v975 = vsel %vm973, %v972, %v970
      %v976 = vlaneseq
      %v977 = vshrl.u32 %v976, 7
      %v978 = vsub.s32 0, %v977
      %v979 = vrot.slane %v336, %v978
      %v980 = vlaneseq
      %v981 = vshrl.u32 %v980, 7
      %v982 = vsub.s32 0, %v981
      %v983 = vrot.slane %v337, %v982
      %v984 = vmul.f32 %v974, %v979
      %v985 = vmul.f32 %v975, %v983
      %986 = vst [vmem:[#allocation2 + $0x40] sm:$0xf] %v984
      %987 = vst [vmem:[#allocation2 + $0x48] sm:$0xf] %v985
      %v988 = vld [vmem:[%s5] sm:$0xf]
      %v989 = vld [vmem:[#allocation2] sm:$0xff]
      %v990 = vld [vmem:[#allocation2 + $0x8] sm:$0xff]
      %v991 = vld [vmem:[#allocation2 + $0x10] sm:$0xff]
      %v992 = vld [vmem:[#allocation2 + $0x18] sm:$0xff]
      %v993 = vld [vmem:[#allocation2 + $0x20] sm:$0xff]
      %v994 = vld [vmem:[#allocation2 + $0x28] sm:$0xff]
      %v995 = vld [vmem:[#allocation2 + $0x30] sm:$0xff]
      %v996 = vld [vmem:[#allocation2 + $0x38] sm:$0xff]
      %v997 = vld [vmem:[#allocation2 + $0x40] sm:$0xf]
      %v998 = vld [vmem:[#allocation2 + $0x48] sm:$0xf]
      %v999 = vld [vmem:[%s6] sm:$0xff]
      %v1001 = vcombine.high %v999, %v999
      %vm1003 = vcmask 293888
      %v1005 = vsel %vm1003, %v988, 0
      %vm1007 = vcmask 1043456
      %v1009 = vsel %vm1007, %v997, 0
      %v1012 = vsel %vm1007, %v998, 0
      %1014 = vmatprep.subr.mxu0 %v990
      %1015 = vmatpush1.msra.mxu0 %v989
      %1016 = vmatprep.subr.mxu0 %v992
      %1017 = vmatpush1.msra.mxu0 %v991
      %1018 = vmatprep.subr.mxu0 %v994
      %1019 = vmatpush1.msra.mxu0 %v993
      %1020 = vmatprep.subr.mxu0 %v996
      %1021 = vmatpush1.msra.mxu0 %v995
      %1022 = vmatprep.subr.mxu0 %v1012
      %1023 = vmatpush1.msra.mxu0 %v1009
      %1024 = vmatprep.subr.mxu0 0.0
      %1025 = vmatpush1.msra.mxu0 0.0
      %1026 = vmatprep.subr.mxu0 0.0
      %1027 = vmatpush1.msra.mxu0 0.0
      %1028 = vmatprep.subr.mxu0 0.0
      %1029 = vmatpush1.msra.mxu0 0.0
      %1030 = vmatprep.subr.mxu0 0.0
      %1031 = vmatpush1.msra.mxu0 0.0
      %1032 = vmatprep.subr.mxu0 0.0
      %1033 = vmatpush1.msra.mxu0 0.0
      %1034 = vmatprep.subr.mxu0 0.0
      %1035 = vmatpush1.msra.mxu0 0.0
      %1036 = vmatprep.subr.mxu0 0.0
      %1037 = vmatpush1.msra.mxu0 0.0
      %1038 = vmatprep.subr.mxu0 0.0
      %1039 = vmatpush1.msra.mxu0 0.0
      %1040 = vmatprep.subr.mxu0 0.0
      %1041 = vmatpush1.msra.mxu0 0.0
      %1042 = vmatprep.subr.mxu0 0.0
      %1043 = vmatpush1.msra.mxu0 0.0
      %1044 = vmatprep.subr.mxu0 0.0
      %1045 = vmatpush1.msra.mxu0 0.0
      %1046 = vmatprep.subr.mxu0 0.0
      %1047 = vmatpush1.msra.mxu0 0.0
      %1048 = vmatprep.subr.mxu0 0.0
      %1049 = vmatpush1.msra.mxu0 0.0
      %1050 = vmatprep.subr.mxu0 0.0
      %1051 = vmatpush1.msra.mxu0 0.0
      %1052 = vmatprep.subr.mxu0 0.0
      %1053 = vmatpush1.msra.mxu0 0.0
      %1054 = vmatprep.subr.mxu0 0.0
      %1055 = vmatpush1.msra.mxu0 0.0
      %1056 = vmatprep.subr.mxu0 0.0
      %1057 = vmatpush1.msra.mxu0 0.0
      %1058 = vmatprep.subr.mxu0 0.0
      %1059 = vmatpush1.msra.mxu0 0.0
      %1060 = vmatprep.subr.mxu0 0.0
      %1061 = vmatpush1.msra.mxu0 0.0
      %1062 = vmatprep.subr.mxu0 0.0
      %1063 = vmatpush1.msra.mxu0 0.0
      %1064 = vmatprep.subr.mxu0 0.0
      %1065 = vmatpush1.msra.mxu0 0.0
      %1066 = vmatprep.subr.mxu0 0.0
      %1067 = vmatpush1.msra.mxu0 0.0
      %1068 = vmatprep.subr.mxu0 0.0
      %1069 = vmatpush1.msra.mxu0 0.0
      %1070 = vmatprep.subr.mxu0 0.0
      %1071 = vmatpush1.msra.mxu0 0.0
      %1072 = vmatprep.subr.mxu0 0.0
      %1073 = vmatpush1.msra.mxu0 0.0
      %1074 = vmatprep.subr.mxu0 0.0
      %1075 = vmatpush1.msra.mxu0 0.0
      %1076 = vmatprep.subr.mxu0 0.0
      %1077 = vmatpush1.msra.mxu0 0.0
      %1078 = vmatprep.mubr.f32.mxu0 0.0
      %1079 = vmatmul.mubr.f32.gmra.mrb[0].mxu0 %v1005
      %v1080 = vpop.f32.mrb[0].mxu0
      %v1081 = vadd.f32 %v999, %v1080
      %v1082 = vpop.f32.mrb[0].mxu0
      %v1083 = vadd.f32 %v1001, %v1082
      %1084 = vdwg.mxu0
      %s1085 = scalar_lea.vmem %s3, 4
      %v1086 = vld [vmem:[%s1085] sm:$0xf]
      %s1087 = scalar_lea.vmem %s4, 4
      %v1088 = vld [vmem:[%s1087] sm:$0xf]
      %1089 = vmatprep.subr.mxu0 0.0
      %1090 = vmatpush1.msra.mxu0 %v338
      %1091 = vmatprep.subr.mxu0 0.0
      %1092 = vmatpush1.msra.mxu0 %v339
      %1093 = vmatprep.subr.mxu0 0.0
      %1094 = vmatpush1.msra.mxu0 %v340
      %1095 = vmatprep.subr.mxu0 0.0
      %1096 = vmatpush1.msra.mxu0 %v341
      %1097 = vmatprep.subr.mxu0 0.0
      %1098 = vmatpush1.msra.mxu0 %v342
      %1099 = vmatprep.subr.mxu0 0.0
      %1100 = vmatpush1.msra.mxu0 %v343
      %1101 = vmatprep.subr.mxu0 0.0
      %1102 = vmatpush1.msra.mxu0 %v344
      %1103 = vmatprep.subr.mxu0 0.0
      %1104 = vmatpush1.msra.mxu0 %v345
      %1105 = vmatprep.subr.mxu0 0.0
      %1106 = vmatpush1.msra.mxu0 %v346
      %1107 = vmatprep.subr.mxu0 0.0
      %1108 = vmatpush1.msra.mxu0 %v347
      %1109 = vmatprep.subr.mxu0 0.0
      %1110 = vmatpush1.msra.mxu0 %v348
      %1111 = vmatprep.subr.mxu0 0.0
      %1112 = vmatpush1.msra.mxu0 %v349
      %1113 = vmatprep.subr.mxu0 0.0
      %1114 = vmatpush1.msra.mxu0 %v350
      %1115 = vmatprep.subr.mxu0 0.0
      %1116 = vmatpush1.msra.mxu0 %v351
      %1117 = vmatprep.subr.mxu0 0.0
      %1118 = vmatpush1.msra.mxu0 %v352
      %1119 = vmatprep.subr.mxu0 0.0
      %1120 = vmatpush1.msra.mxu0 %v353
      %1121 = vmatprep.subr.mxu0 0.0
      %1122 = vmatpush1.msra.mxu0 %v354
      %1123 = vmatprep.subr.mxu0 0.0
      %1124 = vmatpush1.msra.mxu0 %v355
      %1125 = vmatprep.subr.mxu0 0.0
      %1126 = vmatpush1.msra.mxu0 %v356
      %1127 = vmatprep.subr.mxu0 0.0
      %1128 = vmatpush1.msra.mxu0 %v357
      %1129 = vmatprep.subr.mxu0 0.0
      %1130 = vmatpush1.msra.mxu0 %v358
      %1131 = vmatprep.subr.mxu0 0.0
      %1132 = vmatpush1.msra.mxu0 %v359
      %1133 = vmatprep.subr.mxu0 0.0
      %1134 = vmatpush1.msra.mxu0 %v360
      %1135 = vmatprep.subr.mxu0 0.0
      %1136 = vmatpush1.msra.mxu0 %v361
      %1137 = vmatprep.subr.mxu0 0.0
      %1138 = vmatpush1.msra.mxu0 %v362
      %1139 = vmatprep.subr.mxu0 0.0
      %1140 = vmatpush1.msra.mxu0 %v363
      %1141 = vmatprep.subr.mxu0 0.0
      %1142 = vmatpush1.msra.mxu0 %v364
      %1143 = vmatprep.subr.mxu0 0.0
      %1144 = vmatpush1.msra.mxu0 %v365
      %1145 = vmatprep.subr.mxu0 0.0
      %1146 = vmatpush1.msra.mxu0 %v366
      %1147 = vmatprep.subr.mxu0 0.0
      %1148 = vmatpush1.msra.mxu0 %v367
      %1149 = vmatprep.subr.mxu0 0.0
      %1150 = vmatpush1.msra.mxu0 %v368
      %1151 = vmatprep.subr.mxu0 0.0
      %1152 = vmatpush1.msra.mxu0 %v369
      %1153 = vmatprep.mubr.f32.mxu0 %v1083
      %1154 = vmatmul.mubr.f32.gmra.mrb[0].mxu0 %v1081
      %v1155 = vpop.f32.mrb[0].mxu0
      %v1156 = vadd.f32 0.0, %v1155
      %v1157 = vpop.f32.mrb[0].mxu0
      %1158 = vdwg.mxu0
      %v1159 = vmul.f32 %v1156, 0.00390625
      %v1161 = vsel %vm446, %v1159, 0
      %1163 = vmatprep.subr.mxu0 0.0
      %1164 = vmatpush1.xpose.msra.mxu0 %v451
      %1165 = vmatprep.subr.mxu0 0.0
      %1166 = vmatpush1.xpose.msra.mxu0 %v454
      %1167 = vmatprep.subr.mxu0 0.0
      %1168 = vmatpush1.xpose.msra.mxu0 %v457
      %1169 = vmatprep.subr.mxu0 0.0
      %1170 = vmatpush1.xpose.msra.mxu0 %v460
      %1171 = vmatprep.subr.mxu0 0.0
      %1172 = vmatpush1.xpose.msra.mxu0 %v463
      %1173 = vmatprep.subr.mxu0 0.0
      %1174 = vmatpush1.xpose.msra.mxu0 %v466
      %1175 = vmatprep.subr.mxu0 0.0
      %1176 = vmatpush1.xpose.msra.mxu0 %v469
      %1177 = vmatprep.subr.mxu0 0.0
      %1178 = vmatpush1.xpose.msra.mxu0 %v472
      %1179 = vmatprep.subr.mxu0 0.0
      %1180 = vmatpush1.xpose.msra.mxu0 %v475
      %1181 = vmatprep.subr.mxu0 0.0
      %1182 = vmatpush1.xpose.msra.mxu0 %v478
      %1183 = vmatprep.subr.mxu0 0.0
      %1184 = vmatpush1.xpose.msra.mxu0 %v481
      %1185 = vmatprep.subr.mxu0 0.0
      %1186 = vmatpush1.xpose.msra.mxu0 %v484
      %1187 = vmatprep.subr.mxu0 0.0
      %1188 = vmatpush1.xpose.msra.mxu0 %v487
      %1189 = vmatprep.subr.mxu0 0.0
      %1190 = vmatpush1.xpose.msra.mxu0 %v490
      %1191 = vmatprep.subr.mxu0 0.0
      %1192 = vmatpush1.xpose.msra.mxu0 %v493
      %1193 = vmatprep.subr.mxu0 0.0
      %1194 = vmatpush1.xpose.msra.mxu0 %v496
      %1195 = vmatprep.subr.mxu0 0.0
      %1196 = vmatpush1.xpose.msra.mxu0 %v499
      %1197 = vmatprep.subr.mxu0 0.0
      %1198 = vmatpush1.xpose.msra.mxu0 %v502
      %1199 = vmatprep.subr.mxu0 0.0
      %1200 = vmatpush1.xpose.msra.mxu0 %v505
      %1201 = vmatprep.subr.mxu0 0.0
      %1202 = vmatpush1.xpose.msra.mxu0 %v508
      %1203 = vmatprep.subr.mxu0 0.0
      %1204 = vmatpush1.xpose.msra.mxu0 %v511
      %1205 = vmatprep.subr.mxu0 0.0
      %1206 = vmatpush1.xpose.msra.mxu0 %v514
      %1207 = vmatprep.subr.mxu0 0.0
      %1208 = vmatpush1.xpose.msra.mxu0 %v517
      %1209 = vmatprep.subr.mxu0 0.0
      %1210 = vmatpush1.xpose.msra.mxu0 %v520
      %1211 = vmatprep.subr.mxu0 0.0
      %1212 = vmatpush1.xpose.msra.mxu0 %v523
      %1213 = vmatprep.subr.mxu0 0.0
      %1214 = vmatpush1.xpose.msra.mxu0 %v526
      %1215 = vmatprep.subr.mxu0 0.0
      %1216 = vmatpush1.xpose.msra.mxu0 %v529
      %1217 = vmatprep.subr.mxu0 0.0
      %1218 = vmatpush1.xpose.msra.mxu0 %v532
      %1219 = vmatprep.subr.mxu0 0.0
      %1220 = vmatpush1.xpose.msra.mxu0 %v535
      %1221 = vmatprep.subr.mxu0 0.0
      %1222 = vmatpush1.xpose.msra.mxu0 %v538
      %1223 = vmatprep.subr.mxu0 0.0
      %1224 = vmatpush1.xpose.msra.mxu0 %v541
      %1225 = vmatprep.subr.mxu0 0.0
      %1226 = vmatpush1.xpose.msra.mxu0 %v544
      %1227 = vmatprep.mubr.f32.mxu0 0.0
      %1228 = vmatmul.mubr.f32.gmra.mrb[0].mxu0 %v1161
      %v1229 = vpop.f32.mrb[0].mxu0
      %v1230 = vadd.f32 0.0, %v1229
      %v1231 = vpop.f32.mrb[0].mxu0
      %v1232 = vadd.f32 0.0, %v1231
      %1233 = vdwg.mxu0
      %v1234 = vsub.f32 %v1081, %v1230
      %v1235 = vsub.f32 %v1083, %v1232
      %v1236 = vmul.f32 %v1234, %v1234
      %v1237 = vmul.f32 %v1235, %v1235
      %1238 = vmatprep.subr.mxu0 0.0
      %1239 = vmatpush1.msra.mxu0 %v338
      %1240 = vmatprep.subr.mxu0 0.0
      %1241 = vmatpush1.msra.mxu0 %v339
      %1242 = vmatprep.subr.mxu0 0.0
      %1243 = vmatpush1.msra.mxu0 %v340
      %1244 = vmatprep.subr.mxu0 0.0
      %1245 = vmatpush1.msra.mxu0 %v341
      %1246 = vmatprep.subr.mxu0 0.0
      %1247 = vmatpush1.msra.mxu0 %v342
      %1248 = vmatprep.subr.mxu0 0.0
      %1249 = vmatpush1.msra.mxu0 %v343
      %1250 = vmatprep.subr.mxu0 0.0
      %1251 = vmatpush1.msra.mxu0 %v344
      %1252 = vmatprep.subr.mxu0 0.0
      %1253 = vmatpush1.msra.mxu0 %v345
      %1254 = vmatprep.subr.mxu0 0.0
      %1255 = vmatpush1.msra.mxu0 %v346
      %1256 = vmatprep.subr.mxu0 0.0
      %1257 = vmatpush1.msra.mxu0 %v347
      %1258 = vmatprep.subr.mxu0 0.0
      %1259 = vmatpush1.msra.mxu0 %v348
      %1260 = vmatprep.subr.mxu0 0.0
      %1261 = vmatpush1.msra.mxu0 %v349
      %1262 = vmatprep.subr.mxu0 0.0
      %1263 = vmatpush1.msra.mxu0 %v350
      %1264 = vmatprep.subr.mxu0 0.0
      %1265 = vmatpush1.msra.mxu0 %v351
      %1266 = vmatprep.subr.mxu0 0.0
      %1267 = vmatpush1.msra.mxu0 %v352
      %1268 = vmatprep.subr.mxu0 0.0
      %1269 = vmatpush1.msra.mxu0 %v353
      %1270 = vmatprep.subr.mxu0 0.0
      %1271 = vmatpush1.msra.mxu0 %v354
      %1272 = vmatprep.subr.mxu0 0.0
      %1273 = vmatpush1.msra.mxu0 %v355
      %1274 = vmatprep.subr.mxu0 0.0
      %1275 = vmatpush1.msra.mxu0 %v356
      %1276 = vmatprep.subr.mxu0 0.0
      %1277 = vmatpush1.msra.mxu0 %v357
      %1278 = vmatprep.subr.mxu0 0.0
      %1279 = vmatpush1.msra.mxu0 %v358
      %1280 = vmatprep.subr.mxu0 0.0
      %1281 = vmatpush1.msra.mxu0 %v359
      %1282 = vmatprep.subr.mxu0 0.0
      %1283 = vmatpush1.msra.mxu0 %v360
      %1284 = vmatprep.subr.mxu0 0.0
      %1285 = vmatpush1.msra.mxu0 %v361
      %1286 = vmatprep.subr.mxu0 0.0
      %1287 = vmatpush1.msra.mxu0 %v362
      %1288 = vmatprep.subr.mxu0 0.0
      %1289 = vmatpush1.msra.mxu0 %v363
      %1290 = vmatprep.subr.mxu0 0.0
      %1291 = vmatpush1.msra.mxu0 %v364
      %1292 = vmatprep.subr.mxu0 0.0
      %1293 = vmatpush1.msra.mxu0 %v365
      %1294 = vmatprep.subr.mxu0 0.0
      %1295 = vmatpush1.msra.mxu0 %v366
      %1296 = vmatprep.subr.mxu0 0.0
      %1297 = vmatpush1.msra.mxu0 %v367
      %1298 = vmatprep.subr.mxu0 0.0
      %1299 = vmatpush1.msra.mxu0 %v368
      %1300 = vmatprep.subr.mxu0 0.0
      %1301 = vmatpush1.msra.mxu0 %v369
      %1302 = vmatprep.mubr.f32.mxu0 %v1237
      %1303 = vmatmul.mubr.f32.gmra.mrb[0].mxu0 %v1236
      %v1304 = vpop.f32.mrb[0].mxu0
      %v1305 = vadd.f32 0.0, %v1304
      %v1306 = vpop.f32.mrb[0].mxu0
      %1307 = vdwg.mxu0
      %v1308 = vmul.f32 %v1305, 0.00390625
      %v1310 = vsel %vm446, %v1308, 0
      %1312 = vmatprep.subr.mxu0 0.0
      %1313 = vmatpush1.xpose.msra.mxu0 %v451
      %1314 = vmatprep.subr.mxu0 0.0
      %1315 = vmatpush1.xpose.msra.mxu0 %v454
      %1316 = vmatprep.subr.mxu0 0.0
      %1317 = vmatpush1.xpose.msra.mxu0 %v457
      %1318 = vmatprep.subr.mxu0 0.0
      %1319 = vmatpush1.xpose.msra.mxu0 %v460
      %1320 = vmatprep.subr.mxu0 0.0
      %1321 = vmatpush1.xpose.msra.mxu0 %v463
      %1322 = vmatprep.subr.mxu0 0.0
      %1323 = vmatpush1.xpose.msra.mxu0 %v466
      %1324 = vmatprep.subr.mxu0 0.0
      %1325 = vmatpush1.xpose.msra.mxu0 %v469
      %1326 = vmatprep.subr.mxu0 0.0
      %1327 = vmatpush1.xpose.msra.mxu0 %v472
      %1328 = vmatprep.subr.mxu0 0.0
      %1329 = vmatpush1.xpose.msra.mxu0 %v475
      %1330 = vmatprep.subr.mxu0 0.0
      %1331 = vmatpush1.xpose.msra.mxu0 %v478
      %1332 = vmatprep.subr.mxu0 0.0
      %1333 = vmatpush1.xpose.msra.mxu0 %v481
      %1334 = vmatprep.subr.mxu0 0.0
      %1335 = vmatpush1.xpose.msra.mxu0 %v484
      %1336 = vmatprep.subr.mxu0 0.0
      %1337 = vmatpush1.xpose.msra.mxu0 %v487
      %1338 = vmatprep.subr.mxu0 0.0
      %1339 = vmatpush1.xpose.msra.mxu0 %v490
      %1340 = vmatprep.subr.mxu0 0.0
      %1341 = vmatpush1.xpose.msra.mxu0 %v493
      %1342 = vmatprep.subr.mxu0 0.0
      %1343 = vmatpush1.xpose.msra.mxu0 %v496
      %1344 = vmatprep.subr.mxu0 0.0
      %1345 = vmatpush1.xpose.msra.mxu0 %v499
      %1346 = vmatprep.subr.mxu0 0.0
      %1347 = vmatpush1.xpose.msra.mxu0 %v502
      %1348 = vmatprep.subr.mxu0 0.0
      %1349 = vmatpush1.xpose.msra.mxu0 %v505
      %1350 = vmatprep.subr.mxu0 0.0
      %1351 = vmatpush1.xpose.msra.mxu0 %v508
      %1352 = vmatprep.subr.mxu0 0.0
      %1353 = vmatpush1.xpose.msra.mxu0 %v511
      %1354 = vmatprep.subr.mxu0 0.0
      %1355 = vmatpush1.xpose.msra.mxu0 %v514
      %1356 = vmatprep.subr.mxu0 0.0
      %1357 = vmatpush1.xpose.msra.mxu0 %v517
      %1358 = vmatprep.subr.mxu0 0.0
      %1359 = vmatpush1.xpose.msra.mxu0 %v520
      %1360 = vmatprep.subr.mxu0 0.0
      %1361 = vmatpush1.xpose.msra.mxu0 %v523
      %1362 = vmatprep.subr.mxu0 0.0
      %1363 = vmatpush1.xpose.msra.mxu0 %v526
      %1364 = vmatprep.subr.mxu0 0.0
      %1365 = vmatpush1.xpose.msra.mxu0 %v529
      %1366 = vmatprep.subr.mxu0 0.0
      %1367 = vmatpush1.xpose.msra.mxu0 %v532
      %1368 = vmatprep.subr.mxu0 0.0
      %1369 = vmatpush1.xpose.msra.mxu0 %v535
      %1370 = vmatprep.subr.mxu0 0.0
      %1371 = vmatpush1.xpose.msra.mxu0 %v538
      %1372 = vmatprep.subr.mxu0 0.0
      %1373 = vmatpush1.xpose.msra.mxu0 %v541
      %1374 = vmatprep.subr.mxu0 0.0
      %1375 = vmatpush1.xpose.msra.mxu0 %v544
      %1376 = vmatprep.mubr.f32.mxu0 0.0
      %1377 = vmatmul.mubr.f32.gmra.mrb[0].mxu0 %v1310
      %v1378 = vpop.f32.mrb[0].mxu0
      %v1379 = vadd.f32 1e-05, %v1378
      %v1380 = vpop.f32.mrb[0].mxu0
      %v1381 = vadd.f32 1e-05, %v1380
      %1382 = vdwg.mxu0
      %v1383 = vrsqrt.pop %v1379
      %v1384 = vrsqrt.pop %v1381
      %v1385 = vmul.f32 %v1234, %v1383
      %v1386 = vmul.f32 %v1235, %v1384
      %1388 = vset.pattern.permute.xlu0 0
      %1389 = vperm.xlu0 %1388, %v1086
      %v1390 = vpop.permute.xlu0 %1389
      %v1392 = vmul.f32 %v1385, %v1390
      %v1393 = vmul.f32 %v1386, %v1390
      %1395 = vset.pattern.permute.xlu0 0
      %1396 = vperm.xlu0 %1395, %v1088
      %v1397 = vpop.permute.xlu0 %1396
      %v1399 = vadd.f32 %v1392, %v1397
      %v1400 = vadd.f32 %v1393, %v1397
      %v1401 = vmax.f32 %v1399, 0.0
      %v1402 = vmax.f32 %v1400, 0.0
      %1403 = vrot.lane.b32.xlu0 %v1401, 17
      %v1404 = vpop.permute.xlu0 %1403
      %1405 = vrot.lane.b32.xlu0 %v1402, 17
      %v1406 = vpop.permute.xlu0 %1405
      %v1407 = vsel %vm814, %v1404, %v1406
      %v1408 = vsel %vm814, %v1406, %v1404
      %v1409 = vmul.f32 %v1408, %v820
      %v1410 = vmul.f32 %v1407, %v824
      %1411 = vst [vmem:[#allocation2] sm:$0xf] %v1409
      %1412 = vst [vmem:[#allocation2 + $0x8] sm:$0xf] %v1410
      %1413 = vrot.lane.b32.xlu0 %v1401, 16
      %v1414 = vpop.permute.xlu0 %1413
      %1415 = vrot.lane.b32.xlu0 %v1402, 16
      %v1416 = vpop.permute.xlu0 %1415
      %v1417 = vsel %vm833, %v1414, %v1416
      %v1418 = vsel %vm833, %v1416, %v1414
      %v1419 = vmul.f32 %v1418, %v839
      %v1420 = vmul.f32 %v1417, %v843
      %v1423 = vrot.slane %v1419, 4
      %v1424 = vrot.slane %v1420, 4
      %1427 = vst [vmem:[#allocation2] sm:$0xf0] %v1423
      %1428 = vst [vmem:[#allocation2 + $0x8] sm:$0xf0] %v1424
      %1429 = vrot.lane.b32.xlu0 %v1401, 15
      %v1430 = vpop.permute.xlu0 %1429
      %1431 = vrot.lane.b32.xlu0 %v1402, 15
      %v1432 = vpop.permute.xlu0 %1431
      %v1433 = vsel %vm858, %v1430, %v1432
      %v1434 = vsel %vm858, %v1432, %v1430
      %v1435 = vmul.f32 %v1434, %v864
      %v1436 = vmul.f32 %v1433, %v868
      %1437 = vst [vmem:[#allocation2 + $0x10] sm:$0xf] %v1435
      %1438 = vst [vmem:[#allocation2 + $0x18] sm:$0xf] %v1436
      %1439 = vrot.lane.b32.xlu0 %v1401, 1
      %v1440 = vpop.permute.xlu0 %1439
      %1441 = vrot.lane.b32.xlu0 %v1402, 1
      %v1442 = vpop.permute.xlu0 %1441
      %v1443 = vsel %vm877, %v1440, %v1442
      %v1444 = vsel %vm877, %v1442, %v1440
      %v1445 = vmul.f32 %v1444, %v883
      %v1446 = vmul.f32 %v1443, %v887
      %v1449 = vrot.slane %v1445, 4
      %v1450 = vrot.slane %v1446, 4
      %1453 = vst [vmem:[#allocation2 + $0x10] sm:$0xf0] %v1449
      %1454 = vst [vmem:[#allocation2 + $0x18] sm:$0xf0] %v1450
      %1455 = vst [vmem:[#allocation2 + $0x20] sm:$0xf] %v1401
      %1456 = vst [vmem:[#allocation2 + $0x28] sm:$0xf] %v1402
      %1457 = vrot.lane.b32.xlu0 %v1401, 127
      %v1458 = vpop.permute.xlu0 %1457
      %1459 = vrot.lane.b32.xlu0 %v1402, 127
      %v1460 = vpop.permute.xlu0 %1459
      %v1461 = vsel %vm904, %v1458, %v1460
      %v1462 = vsel %vm904, %v1460, %v1458
      %v1463 = vmul.f32 %v1461, %v910
      %v1464 = vmul.f32 %v1462, %v914
      %v1467 = vrot.slane %v1463, 4
      %v1468 = vrot.slane %v1464, 4
      %1471 = vst [vmem:[#allocation2 + $0x20] sm:$0xf0] %v1467
      %1472 = vst [vmem:[#allocation2 + $0x28] sm:$0xf0] %v1468
      %1473 = vrot.lane.b32.xlu0 %v1401, 113
      %v1474 = vpop.permute.xlu0 %1473
      %1475 = vrot.lane.b32.xlu0 %v1402, 113
      %v1476 = vpop.permute.xlu0 %1475
      %v1477 = vsel %vm929, %v1474, %v1476
      %v1478 = vsel %vm929, %v1476, %v1474
      %v1479 = vmul.f32 %v1477, %v935
      %v1480 = vmul.f32 %v1478, %v939
      %1481 = vst [vmem:[#allocation2 + $0x30] sm:$0xf] %v1479
      %1482 = vst [vmem:[#allocation2 + $0x38] sm:$0xf] %v1480
      %1483 = vrot.lane.b32.xlu0 %v1401, 112
      %v1484 = vpop.permute.xlu0 %1483
      %1485 = vrot.lane.b32.xlu0 %v1402, 112
      %v1486 = vpop.permute.xlu0 %1485
      %v1487 = vsel %vm948, %v1484, %v1486
      %v1488 = vsel %vm948, %v1486, %v1484
      %v1489 = vmul.f32 %v1487, %v954
      %v1490 = vmul.f32 %v1488, %v958
      %v1493 = vrot.slane %v1489, 4
      %v1494 = vrot.slane %v1490, 4
      %1497 = vst [vmem:[#allocation2 + $0x30] sm:$0xf0] %v1493
      %1498 = vst [vmem:[#allocation2 + $0x38] sm:$0xf0] %v1494
      %1499 = vrot.lane.b32.xlu0 %v1401, 111
      %v1500 = vpop.permute.xlu0 %1499
      %1501 = vrot.lane.b32.xlu0 %v1402, 111
      %v1502 = vpop.permute.xlu0 %1501
      %v1503 = vsel %vm973, %v1500, %v1502
      %v1504 = vsel %vm973, %v1502, %v1500
      %v1505 = vmul.f32 %v1503, %v979
      %v1506 = vmul.f32 %v1504, %v983
      %1507 = vst [vmem:[#allocation2 + $0x40] sm:$0xf] %v1505
      %1508 = vst [vmem:[#allocation2 + $0x48] sm:$0xf] %v1506
      %v1509 = vld [vmem:[%s7] sm:$0xf]
      %v1510 = vld [vmem:[#allocation2] sm:$0xff]
      %v1511 = vld [vmem:[#allocation2 + $0x8] sm:$0xff]
      %v1512 = vld [vmem:[#allocation2 + $0x10] sm:$0xff]
      %v1513 = vld [vmem:[#allocation2 + $0x18] sm:$0xff]
      %v1514 = vld [vmem:[#allocation2 + $0x20] sm:$0xff]
      %v1515 = vld [vmem:[#allocation2 + $0x28] sm:$0xff]
      %v1516 = vld [vmem:[#allocation2 + $0x30] sm:$0xff]
      %v1517 = vld [vmem:[#allocation2 + $0x38] sm:$0xff]
      %v1518 = vld [vmem:[#allocation2 + $0x40] sm:$0xf]
      %v1519 = vld [vmem:[#allocation2 + $0x48] sm:$0xf]
      %v1520 = vld [vmem:[%s8] sm:$0xff]
      %v1522 = vcombine.high %v1520, %v1520
      %v1525 = vsel %vm1003, %v1509, 0
      %v1528 = vsel %vm1007, %v1518, 0
      %v1531 = vsel %vm1007, %v1519, 0
      %1533 = vmatprep.subr.mxu0 %v1511
      %1534 = vmatpush1.msra.mxu0 %v1510
      %1535 = vmatprep.subr.mxu0 %v1513
      %1536 = vmatpush1.msra.mxu0 %v1512
      %1537 = vmatprep.subr.mxu0 %v1515
      %1538 = vmatpush1.msra.mxu0 %v1514
      %1539 = vmatprep.subr.mxu0 %v1517
      %1540 = vmatpush1.msra.mxu0 %v1516
      %1541 = vmatprep.subr.mxu0 %v1531
      %1542 = vmatpush1.msra.mxu0 %v1528
      %1543 = vmatprep.subr.mxu0 0.0
      %1544 = vmatpush1.msra.mxu0 0.0
      %1545 = vmatprep.subr.mxu0 0.0
      %1546 = vmatpush1.msra.mxu0 0.0
      %1547 = vmatprep.subr.mxu0 0.0
      %1548 = vmatpush1.msra.mxu0 0.0
      %1549 = vmatprep.subr.mxu0 0.0
      %1550 = vmatpush1.msra.mxu0 0.0
      %1551 = vmatprep.subr.mxu0 0.0
      %1552 = vmatpush1.msra.mxu0 0.0
      %1553 = vmatprep.subr.mxu0 0.0
      %1554 = vmatpush1.msra.mxu0 0.0
      %1555 = vmatprep.subr.mxu0 0.0
      %1556 = vmatpush1.msra.mxu0 0.0
      %1557 = vmatprep.subr.mxu0 0.0
      %1558 = vmatpush1.msra.mxu0 0.0
      %1559 = vmatprep.subr.mxu0 0.0
      %1560 = vmatpush1.msra.mxu0 0.0
      %1561 = vmatprep.subr.mxu0 0.0
      %1562 = vmatpush1.msra.mxu0 0.0
      %1563 = vmatprep.subr.mxu0 0.0
      %1564 = vmatpush1.msra.mxu0 0.0
      %1565 = vmatprep.subr.mxu0 0.0
      %1566 = vmatpush1.msra.mxu0 0.0
      %1567 = vmatprep.subr.mxu0 0.0
      %1568 = vmatpush1.msra.mxu0 0.0
      %1569 = vmatprep.subr.mxu0 0.0
      %1570 = vmatpush1.msra.mxu0 0.0
      %1571 = vmatprep.subr.mxu0 0.0
      %1572 = vmatpush1.msra.mxu0 0.0
      %1573 = vmatprep.subr.mxu0 0.0
      %1574 = vmatpush1.msra.mxu0 0.0
      %1575 = vmatprep.subr.mxu0 0.0
      %1576 = vmatpush1.msra.mxu0 0.0
      %1577 = vmatprep.subr.mxu0 0.0
      %1578 = vmatpush1.msra.mxu0 0.0
      %1579 = vmatprep.subr.mxu0 0.0
      %1580 = vmatpush1.msra.mxu0 0.0
      %1581 = vmatprep.subr.mxu0 0.0
      %1582 = vmatpush1.msra.mxu0 0.0
      %1583 = vmatprep.subr.mxu0 0.0
      %1584 = vmatpush1.msra.mxu0 0.0
      %1585 = vmatprep.subr.mxu0 0.0
      %1586 = vmatpush1.msra.mxu0 0.0
      %1587 = vmatprep.subr.mxu0 0.0
      %1588 = vmatpush1.msra.mxu0 0.0
      %1589 = vmatprep.subr.mxu0 0.0
      %1590 = vmatpush1.msra.mxu0 0.0
      %1591 = vmatprep.subr.mxu0 0.0
      %1592 = vmatpush1.msra.mxu0 0.0
      %1593 = vmatprep.subr.mxu0 0.0
      %1594 = vmatpush1.msra.mxu0 0.0
      %1595 = vmatprep.subr.mxu0 0.0
      %1596 = vmatpush1.msra.mxu0 0.0
      %1597 = vmatprep.mubr.f32.mxu0 0.0
      %1598 = vmatmul.mubr.f32.gmra.mrb[0].mxu0 %v1525
      %v1599 = vpop.f32.mrb[0].mxu0
      %v1600 = vadd.f32 %v1520, %v1599
      %v1601 = vpop.f32.mrb[0].mxu0
      %v1602 = vadd.f32 %v1522, %v1601
      %1603 = vdwg.mxu0
      %s1604 = scalar_lea.vmem %s3, 8
      %v1605 = vld [vmem:[%s1604] sm:$0xf]
      %s1606 = scalar_lea.vmem %s4, 8
      %v1607 = vld [vmem:[%s1606] sm:$0xf]
      %1608 = vmatprep.subr.mxu0 0.0
      %1609 = vmatpush1.msra.mxu0 %v338
      %1610 = vmatprep.subr.mxu0 0.0
      %1611 = vmatpush1.msra.mxu0 %v339
      %1612 = vmatprep.subr.mxu0 0.0
      %1613 = vmatpush1.msra.mxu0 %v340
      %1614 = vmatprep.subr.mxu0 0.0
      %1615 = vmatpush1.msra.mxu0 %v341
      %1616 = vmatprep.subr.mxu0 0.0
      %1617 = vmatpush1.msra.mxu0 %v342
      %1618 = vmatprep.subr.mxu0 0.0
      %1619 = vmatpush1.msra.mxu0 %v343
      %1620 = vmatprep.subr.mxu0 0.0
      %1621 = vmatpush1.msra.mxu0 %v344
      %1622 = vmatprep.subr.mxu0 0.0
      %1623 = vmatpush1.msra.mxu0 %v345
      %1624 = vmatprep.subr.mxu0 0.0
      %1625 = vmatpush1.msra.mxu0 %v346
      %1626 = vmatprep.subr.mxu0 0.0
      %1627 = vmatpush1.msra.mxu0 %v347
      %1628 = vmatprep.subr.mxu0 0.0
      %1629 = vmatpush1.msra.mxu0 %v348
      %1630 = vmatprep.subr.mxu0 0.0
      %1631 = vmatpush1.msra.mxu0 %v349
      %1632 = vmatprep.subr.mxu0 0.0
      %1633 = vmatpush1.msra.mxu0 %v350
      %1634 = vmatprep.subr.mxu0 0.0
      %1635 = vmatpush1.msra.mxu0 %v351
      %1636 = vmatprep.subr.mxu0 0.0
      %1637 = vmatpush1.msra.mxu0 %v352
      %1638 = vmatprep.subr.mxu0 0.0
      %1639 = vmatpush1.msra.mxu0 %v353
      %1640 = vmatprep.subr.mxu0 0.0
      %1641 = vmatpush1.msra.mxu0 %v354
      %1642 = vmatprep.subr.mxu0 0.0
      %1643 = vmatpush1.msra.mxu0 %v355
      %1644 = vmatprep.subr.mxu0 0.0
      %1645 = vmatpush1.msra.mxu0 %v356
      %1646 = vmatprep.subr.mxu0 0.0
      %1647 = vmatpush1.msra.mxu0 %v357
      %1648 = vmatprep.subr.mxu0 0.0
      %1649 = vmatpush1.msra.mxu0 %v358
      %1650 = vmatprep.subr.mxu0 0.0
      %1651 = vmatpush1.msra.mxu0 %v359
      %1652 = vmatprep.subr.mxu0 0.0
      %1653 = vmatpush1.msra.mxu0 %v360
      %1654 = vmatprep.subr.mxu0 0.0
      %1655 = vmatpush1.msra.mxu0 %v361
      %1656 = vmatprep.subr.mxu0 0.0
      %1657 = vmatpush1.msra.mxu0 %v362
      %1658 = vmatprep.subr.mxu0 0.0
      %1659 = vmatpush1.msra.mxu0 %v363
      %1660 = vmatprep.subr.mxu0 0.0
      %1661 = vmatpush1.msra.mxu0 %v364
      %1662 = vmatprep.subr.mxu0 0.0
      %1663 = vmatpush1.msra.mxu0 %v365
      %1664 = vmatprep.subr.mxu0 0.0
      %1665 = vmatpush1.msra.mxu0 %v366
      %1666 = vmatprep.subr.mxu0 0.0
      %1667 = vmatpush1.msra.mxu0 %v367
      %1668 = vmatprep.subr.mxu0 0.0
      %1669 = vmatpush1.msra.mxu0 %v368
      %1670 = vmatprep.subr.mxu0 0.0
      %1671 = vmatpush1.msra.mxu0 %v369
      %1672 = vmatprep.mubr.f32.mxu0 %v1602
      %1673 = vmatmul.mubr.f32.gmra.mrb[0].mxu0 %v1600
      %v1674 = vpop.f32.mrb[0].mxu0
      %v1675 = vadd.f32 0.0, %v1674
      %v1676 = vpop.f32.mrb[0].mxu0
      %1677 = vdwg.mxu0
      %v1678 = vmul.f32 %v1675, 0.00390625
      %v1680 = vsel %vm446, %v1678, 0
      %1682 = vmatprep.subr.mxu0 0.0
      %1683 = vmatpush1.xpose.msra.mxu0 %v451
      %1684 = vmatprep.subr.mxu0 0.0
      %1685 = vmatpush1.xpose.msra.mxu0 %v454
      %1686 = vmatprep.subr.mxu0 0.0
      %1687 = vmatpush1.xpose.msra.mxu0 %v457
      %1688 = vmatprep.subr.mxu0 0.0
      %1689 = vmatpush1.xpose.msra.mxu0 %v460
      %1690 = vmatprep.subr.mxu0 0.0
      %1691 = vmatpush1.xpose.msra.mxu0 %v463
      %1692 = vmatprep.subr.mxu0 0.0
      %1693 = vmatpush1.xpose.msra.mxu0 %v466
      %1694 = vmatprep.subr.mxu0 0.0
      %1695 = vmatpush1.xpose.msra.mxu0 %v469
      %1696 = vmatprep.subr.mxu0 0.0
      %1697 = vmatpush1.xpose.msra.mxu0 %v472
      %1698 = vmatprep.subr.mxu0 0.0
      %1699 = vmatpush1.xpose.msra.mxu0 %v475
      %1700 = vmatprep.subr.mxu0 0.0
      %1701 = vmatpush1.xpose.msra.mxu0 %v478
      %1702 = vmatprep.subr.mxu0 0.0
      %1703 = vmatpush1.xpose.msra.mxu0 %v481
      %1704 = vmatprep.subr.mxu0 0.0
      %1705 = vmatpush1.xpose.msra.mxu0 %v484
      %1706 = vmatprep.subr.mxu0 0.0
      %1707 = vmatpush1.xpose.msra.mxu0 %v487
      %1708 = vmatprep.subr.mxu0 0.0
      %1709 = vmatpush1.xpose.msra.mxu0 %v490
      %1710 = vmatprep.subr.mxu0 0.0
      %1711 = vmatpush1.xpose.msra.mxu0 %v493
      %1712 = vmatprep.subr.mxu0 0.0
      %1713 = vmatpush1.xpose.msra.mxu0 %v496
      %1714 = vmatprep.subr.mxu0 0.0
      %1715 = vmatpush1.xpose.msra.mxu0 %v499
      %1716 = vmatprep.subr.mxu0 0.0
      %1717 = vmatpush1.xpose.msra.mxu0 %v502
      %1718 = vmatprep.subr.mxu0 0.0
      %1719 = vmatpush1.xpose.msra.mxu0 %v505
      %1720 = vmatprep.subr.mxu0 0.0
      %1721 = vmatpush1.xpose.msra.mxu0 %v508
      %1722 = vmatprep.subr.mxu0 0.0
      %1723 = vmatpush1.xpose.msra.mxu0 %v511
      %1724 = vmatprep.subr.mxu0 0.0
      %1725 = vmatpush1.xpose.msra.mxu0 %v514
      %1726 = vmatprep.subr.mxu0 0.0
      %1727 = vmatpush1.xpose.msra.mxu0 %v517
      %1728 = vmatprep.subr.mxu0 0.0
      %1729 = vmatpush1.xpose.msra.mxu0 %v520
      %1730 = vmatprep.subr.mxu0 0.0
      %1731 = vmatpush1.xpose.msra.mxu0 %v523
      %1732 = vmatprep.subr.mxu0 0.0
      %1733 = vmatpush1.xpose.msra.mxu0 %v526
      %1734 = vmatprep.subr.mxu0 0.0
      %1735 = vmatpush1.xpose.msra.mxu0 %v529
      %1736 = vmatprep.subr.mxu0 0.0
      %1737 = vmatpush1.xpose.msra.mxu0 %v532
      %1738 = vmatprep.subr.mxu0 0.0
      %1739 = vmatpush1.xpose.msra.mxu0 %v535
      %1740 = vmatprep.subr.mxu0 0.0
      %1741 = vmatpush1.xpose.msra.mxu0 %v538
      %1742 = vmatprep.subr.mxu0 0.0
      %1743 = vmatpush1.xpose.msra.mxu0 %v541
      %1744 = vmatprep.subr.mxu0 0.0
      %1745 = vmatpush1.xpose.msra.mxu0 %v544
      %1746 = vmatprep.mubr.f32.mxu0 0.0
      %1747 = vmatmul.mubr.f32.gmra.mrb[0].mxu0 %v1680
      %v1748 = vpop.f32.mrb[0].mxu0
      %v1749 = vadd.f32 0.0, %v1748
      %v1750 = vpop.f32.mrb[0].mxu0
      %v1751 = vadd.f32 0.0, %v1750
      %1752 = vdwg.mxu0
      %v1753 = vsub.f32 %v1600, %v1749
      %v1754 = vsub.f32 %v1602, %v1751
      %v1755 = vmul.f32 %v1753, %v1753
      %v1756 = vmul.f32 %v1754, %v1754
      %1757 = vmatprep.subr.mxu0 0.0
      %1758 = vmatpush1.msra.mxu0 %v338
      %1759 = vmatprep.subr.mxu0 0.0
      %1760 = vmatpush1.msra.mxu0 %v339
      %1761 = vmatprep.subr.mxu0 0.0
      %1762 = vmatpush1.msra.mxu0 %v340
      %1763 = vmatprep.subr.mxu0 0.0
      %1764 = vmatpush1.msra.mxu0 %v341
      %1765 = vmatprep.subr.mxu0 0.0
      %1766 = vmatpush1.msra.mxu0 %v342
      %1767 = vmatprep.subr.mxu0 0.0
      %1768 = vmatpush1.msra.mxu0 %v343
      %1769 = vmatprep.subr.mxu0 0.0
      %1770 = vmatpush1.msra.mxu0 %v344
      %1771 = vmatprep.subr.mxu0 0.0
      %1772 = vmatpush1.msra.mxu0 %v345
      %1773 = vmatprep.subr.mxu0 0.0
      %1774 = vmatpush1.msra.mxu0 %v346
      %1775 = vmatprep.subr.mxu0 0.0
      %1776 = vmatpush1.msra.mxu0 %v347
      %1777 = vmatprep.subr.mxu0 0.0
      %1778 = vmatpush1.msra.mxu0 %v348
      %1779 = vmatprep.subr.mxu0 0.0
      %1780 = vmatpush1.msra.mxu0 %v349
      %1781 = vmatprep.subr.mxu0 0.0
      %1782 = vmatpush1.msra.mxu0 %v350
      %1783 = vmatprep.subr.mxu0 0.0
      %1784 = vmatpush1.msra.mxu0 %v351
      %1785 = vmatprep.subr.mxu0 0.0
      %1786 = vmatpush1.msra.mxu0 %v352
      %1787 = vmatprep.subr.mxu0 0.0
      %1788 = vmatpush1.msra.mxu0 %v353
      %1789 = vmatprep.subr.mxu0 0.0
      %1790 = vmatpush1.msra.mxu0 %v354
      %1791 = vmatprep.subr.mxu0 0.0
      %1792 = vmatpush1.msra.mxu0 %v355
      %1793 = vmatprep.subr.mxu0 0.0
      %1794 = vmatpush1.msra.mxu0 %v356
      %1795 = vmatprep.subr.mxu0 0.0
      %1796 = vmatpush1.msra.mxu0 %v357
      %1797 = vmatprep.subr.mxu0 0.0
      %1798 = vmatpush1.msra.mxu0 %v358
      %1799 = vmatprep.subr.mxu0 0.0
      %1800 = vmatpush1.msra.mxu0 %v359
      %1801 = vmatprep.subr.mxu0 0.0
      %1802 = vmatpush1.msra.mxu0 %v360
      %1803 = vmatprep.subr.mxu0 0.0
      %1804 = vmatpush1.msra.mxu0 %v361
      %1805 = vmatprep.subr.mxu0 0.0
      %1806 = vmatpush1.msra.mxu0 %v362
      %1807 = vmatprep.subr.mxu0 0.0
      %1808 = vmatpush1.msra.mxu0 %v363
      %1809 = vmatprep.subr.mxu0 0.0
      %1810 = vmatpush1.msra.mxu0 %v364
      %1811 = vmatprep.subr.mxu0 0.0
      %1812 = vmatpush1.msra.mxu0 %v365
      %1813 = vmatprep.subr.mxu0 0.0
      %1814 = vmatpush1.msra.mxu0 %v366
      %1815 = vmatprep.subr.mxu0 0.0
      %1816 = vmatpush1.msra.mxu0 %v367
      %1817 = vmatprep.subr.mxu0 0.0
      %1818 = vmatpush1.msra.mxu0 %v368
      %1819 = vmatprep.subr.mxu0 0.0
      %1820 = vmatpush1.msra.mxu0 %v369
      %1821 = vmatprep.mubr.f32.mxu0 %v1756
      %1822 = vmatmul.mubr.f32.gmra.mrb[0].mxu0 %v1755
      %v1823 = vpop.f32.mrb[0].mxu0
      %v1824 = vadd.f32 0.0, %v1823
      %v1825 = vpop.f32.mrb[0].mxu0
      %1826 = vdwg.mxu0
      %v1827 = vmul.f32 %v1824, 0.00390625
      %v1829 = vsel %vm446, %v1827, 0
      %1831 = vmatprep.subr.mxu0 0.0
      %1832 = vmatpush1.xpose.msra.mxu0 %v451
      %1833 = vmatprep.subr.mxu0 0.0
      %1834 = vmatpush1.xpose.msra.mxu0 %v454
      %1835 = vmatprep.subr.mxu0 0.0
      %1836 = vmatpush1.xpose.msra.mxu0 %v457
      %1837 = vmatprep.subr.mxu0 0.0
      %1838 = vmatpush1.xpose.msra.mxu0 %v460
      %1839 = vmatprep.subr.mxu0 0.0
      %1840 = vmatpush1.xpose.msra.mxu0 %v463
      %1841 = vmatprep.subr.mxu0 0.0
      %1842 = vmatpush1.xpose.msra.mxu0 %v466
      %1843 = vmatprep.subr.mxu0 0.0
      %1844 = vmatpush1.xpose.msra.mxu0 %v469
      %1845 = vmatprep.subr.mxu0 0.0
      %1846 = vmatpush1.xpose.msra.mxu0 %v472
      %1847 = vmatprep.subr.mxu0 0.0
      %1848 = vmatpush1.xpose.msra.mxu0 %v475
      %1849 = vmatprep.subr.mxu0 0.0
      %1850 = vmatpush1.xpose.msra.mxu0 %v478
      %1851 = vmatprep.subr.mxu0 0.0
      %1852 = vmatpush1.xpose.msra.mxu0 %v481
      %1853 = vmatprep.subr.mxu0 0.0
      %1854 = vmatpush1.xpose.msra.mxu0 %v484
      %1855 = vmatprep.subr.mxu0 0.0
      %1856 = vmatpush1.xpose.msra.mxu0 %v487
      %1857 = vmatprep.subr.mxu0 0.0
      %1858 = vmatpush1.xpose.msra.mxu0 %v490
      %1859 = vmatprep.subr.mxu0 0.0
      %1860 = vmatpush1.xpose.msra.mxu0 %v493
      %1861 = vmatprep.subr.mxu0 0.0
      %1862 = vmatpush1.xpose.msra.mxu0 %v496
      %1863 = vmatprep.subr.mxu0 0.0
      %1864 = vmatpush1.xpose.msra.mxu0 %v499
      %1865 = vmatprep.subr.mxu0 0.0
      %1866 = vmatpush1.xpose.msra.mxu0 %v502
      %1867 = vmatprep.subr.mxu0 0.0
      %1868 = vmatpush1.xpose.msra.mxu0 %v505
      %1869 = vmatprep.subr.mxu0 0.0
      %1870 = vmatpush1.xpose.msra.mxu0 %v508
      %1871 = vmatprep.subr.mxu0 0.0
      %1872 = vmatpush1.xpose.msra.mxu0 %v511
      %1873 = vmatprep.subr.mxu0 0.0
      %1874 = vmatpush1.xpose.msra.mxu0 %v514
      %1875 = vmatprep.subr.mxu0 0.0
      %1876 = vmatpush1.xpose.msra.mxu0 %v517
      %1877 = vmatprep.subr.mxu0 0.0
      %1878 = vmatpush1.xpose.msra.mxu0 %v520
      %1879 = vmatprep.subr.mxu0 0.0
      %1880 = vmatpush1.xpose.msra.mxu0 %v523
      %1881 = vmatprep.subr.mxu0 0.0
      %1882 = vmatpush1.xpose.msra.mxu0 %v526
      %1883 = vmatprep.subr.mxu0 0.0
      %1884 = vmatpush1.xpose.msra.mxu0 %v529
      %1885 = vmatprep.subr.mxu0 0.0
      %1886 = vmatpush1.xpose.msra.mxu0 %v532
      %1887 = vmatprep.subr.mxu0 0.0
      %1888 = vmatpush1.xpose.msra.mxu0 %v535
      %1889 = vmatprep.subr.mxu0 0.0
      %1890 = vmatpush1.xpose.msra.mxu0 %v538
      %1891 = vmatprep.subr.mxu0 0.0
      %1892 = vmatpush1.xpose.msra.mxu0 %v541
      %1893 = vmatprep.subr.mxu0 0.0
      %1894 = vmatpush1.xpose.msra.mxu0 %v544
      %1895 = vmatprep.mubr.f32.mxu0 0.0
      %1896 = vmatmul.mubr.f32.gmra.mrb[0].mxu0 %v1829
      %v1897 = vpop.f32.mrb[0].mxu0
      %v1898 = vadd.f32 1e-05, %v1897
      %v1899 = vpop.f32.mrb[0].mxu0
      %v1900 = vadd.f32 1e-05, %v1899
      %1901 = vdwg.mxu0
      %v1902 = vrsqrt.pop %v1898
      %v1903 = vrsqrt.pop %v1900
      %v1904 = vmul.f32 %v1753, %v1902
      %v1905 = vmul.f32 %v1754, %v1903
      %1907 = vset.pattern.permute.xlu0 0
      %1908 = vperm.xlu0 %1907, %v1605
      %v1909 = vpop.permute.xlu0 %1908
      %v1911 = vmul.f32 %v1904, %v1909
      %v1912 = vmul.f32 %v1905, %v1909
      %1914 = vset.pattern.permute.xlu0 0
      %1915 = vperm.xlu0 %1914, %v1607
      %v1916 = vpop.permute.xlu0 %1915
      %v1918 = vadd.f32 %v1911, %v1916
      %v1919 = vadd.f32 %v1912, %v1916
      %v1922 = vcombine.low %v1918, %v1919
      %1924 = vst [vmem:[%s332] sm:$0xff] %v1922
      %p1925 = scmp.lt.s32.totalorder %s20, 1
      %s1926 = scalar_select %p1925, %s20, 1
      %s1927 = smul.addr %s1926, 2
      %s1928 = smul.addr %s1927, 4
      %s1929 = scalar_lea.vmem %s9, %s1928
      // Predicated region
      $region57: #{node_forward.1} parent=55 // pred_check
        %p1930 = pneg %p232
      $region58: #{node_forward.1} parent=55 // pred_check_branch
        %1932 = sbr.rel (%p1930) target = $region60
      $region59: #{node_forward.1} parent=55 // pred_region
        _
      $region60: #{node_forward.1} parent=55 // pred_fallthru
        _
    $region56: #{node_forward.1} parent=5 // pred_fallthru
      _
    %p1933 = scmp.le.s32.totalorder 2, %s15
    // Predicated region
    $region61: #{node_forward.1} parent=5 // pred_check
      %p1934 = pneg %p1933
    $region62: #{node_forward.1} parent=5 // pred_check_branch
      %1936 = sbr.rel (%p1934) target = $region64
    $region63: #{node_forward.1} parent=5 // pred_region
      %s1937 = ssub.s32 %s15, 2
      // Predicated region
      $region65: #{node_forward.1} parent=63 // pred_check
        %p1938 = pneg %p238
      $region66: #{node_forward.1} parent=63 // pred_check_branch
        %1940 = sbr.rel (%p1938) target = $region68
      $region67: #{node_forward.1} parent=63 // pred_region
        %p1941 = scmp.lt.s32.totalorder %s21, 1
        %s1942 = scalar_select %p1941, %s21, 1
        %s1943 = smul.addr %s1942, 2
        %s1944 = smul.addr %s1943, 4
        %s1945 = scalar_lea.vmem %s9, %s1944
      $region68: #{node_forward.1} parent=63 // pred_fallthru
        _
    $region64: #{node_forward.1} parent=5 // pred_fallthru
      _
  $region6: #{node_forward.1} parent=0 // loop_footer
    %s19 = sadd.s32 1, %s15
  $region7: #{node_forward.1} parent=0 // loop_footer_branch
    %14 = sbr.rel target = $region3
  $region8: #{node_forward.1} parent=0 // loop_exit
    _

</llo_original>
